<compile_context>
chip_gen: v7x
topology: tpu7x:2x2x1
jax: 0.10.0
libtpu: 0.0.40
codegen_flags: <defaults>
</compile_context>

<pallas_src>
import jax
import jax.numpy as jnp
from jax.experimental import pallas as pl
from jax.experimental.pallas import tpu as pltpu

_LANE = 128


def tl_nn3_kernel(scal_ref, x1_ref, x2_ref, x3_ref, asm_ref, o_ref):
    # scal_ref (SMEM f32[13]): [t'1..3, b'1..3, c'1..3, w1..3, c4] where
    #   t' = 0.5*t, b' = 0.5*b, c'_i = beta_i - 0.5*sum(softmax(A_i)),
    #   w = softmax(A4), c4 = beta4 - sum(w).
    # x{i}_ref (VMEM): (bn, T) batch-major input tile, native dtype.
    # asm_ref  (VMEM): (3, T, 1) columns of 0.5*softmax(A_i).
    # o_ref    (VMEM): (1, bn) lane-dense output row.
    bn = o_ref.shape[1]
    acc = jnp.full((1, bn), scal_ref[12], dtype=jnp.float32)
    for i, x_ref in enumerate((x1_ref, x2_ref, x3_ref)):
        # XLU minor-dim swap: (bn, T) -> (T, bn); T on sublanes, batch on lanes.
        xt = pltpu.einshape("nt->tn", x_ref[...]).astype(jnp.float32)
        # sigmoid folded into precomputed constants: only mul, sub, tanh remain.
        s = jnp.tanh(xt * scal_ref[i] - scal_ref[3 + i])                 # (T, bn)
        # weighted sublane reduce over T (VPU mul + XLU reduce).
        wb = scal_ref[6 + i] + jnp.sum(asm_ref[i] * s, axis=0, keepdims=True)
        act = jnp.maximum(0.0, jnp.minimum(1.0, wb))                     # clamp
        acc = acc + scal_ref[9 + i] * act                                # running combine
    o_ref[...] = jnp.maximum(0.0, jnp.minimum(1.0, acc))


def _choose_tiling(N, block_n=None, max_block_lanes=4096, min_steps=4):
    """Return (block_n, padded_N): block_n multiple of 128, padded_N multiple
    of block_n.  Targets >=4 grid steps (even, so both v7x TCs get >=2) with
    512..4096-lane tiles; 4096-lane cap keeps double-buffered (bn, T) blocks
    (lane-padded to 128 in VMEM) inside the 32 MiB scoped-VMEM budget."""
    if block_n is not None:
        assert block_n % _LANE == 0, block_n
        return block_n, pl.cdiv(N, block_n) * block_n
    chunks = pl.cdiv(N, _LANE)
    if chunks <= min_steps:
        bn = chunks * _LANE
        return bn, bn
    steps = max(min_steps, pl.cdiv(chunks, max_block_lanes // _LANE))
    steps += steps % 2                      # even grid for the 2 v7x TensorCores
    bn = pl.cdiv(chunks, steps) * _LANE
    return bn, steps * bn


def tl_nn3_forward(x1, x2, x3, params, *, block_n=None):
    """x1, x2, x3: [N, T] arrays (torch layout, f32 or bf16). Returns [N] f32."""
    N, T = x1.shape
    assert x2.shape == (N, T) and x3.shape == (N, T)
    bn, n_pad = _choose_tiling(N, block_n)

    # ---- parameter-only precompute (hoisted out of the sequential grid loop) ----
    t = params["t"].astype(jnp.float32).reshape(3)
    b = params["b"].astype(jnp.float32).reshape(3)
    A_sm = jax.nn.softmax(params["A"].astype(jnp.float32).reshape(3, T), axis=1)
    betas = params["betas"].astype(jnp.float32).reshape(4)
    w = jax.nn.softmax(params["A4"].astype(jnp.float32).reshape(3))
    scal = jnp.concatenate([
        0.5 * t,                                    # t'
        0.5 * b,                                    # b'
        betas[:3] - 0.5 * jnp.sum(A_sm, axis=1),    # c'
        w,                                          # softmax(A4)
        (betas[3] - jnp.sum(w)).reshape(1),         # c4
    ]).astype(jnp.float32)                          # (13,) scalars -> SMEM
    asm_cols = (0.5 * A_sm).reshape(3, T, 1)        # 0.5*softmax(A_i) columns

    # No wrapper-side relayout/upcast of the payload.  Pad the batch only when
    # N is not a multiple of the tile (correctness fallback; demo needs none).
    # TODO(synk): a time-major [T, N] producer would also remove the in-kernel
    # XLU transpose.
    def pad(x):
        return x if n_pad == N else jnp.pad(x, ((0, n_pad - N), (0, 0)))
    x1p, x2p, x3p = pad(x1), pad(x2), pad(x3)

    x_spec = pl.BlockSpec((bn, T), lambda i: (i, 0))
    out = pl.pallas_call(
        tl_nn3_kernel,
        out_shape=jax.ShapeDtypeStruct((1, n_pad), jnp.float32),
        grid_spec=pltpu.PrefetchScalarGridSpec(
            num_scalar_prefetch=0,
            grid=(n_pad // bn,),
            in_specs=[
                pl.BlockSpec(memory_space=pltpu.MemorySpace.SMEM),   # 13 scalars
                x_spec, x_spec, x_spec,                              # (bn, T) tiles
                pl.BlockSpec((3, T, 1), lambda i: (0, 0, 0)),        # asm' columns
            ],
            out_specs=pl.BlockSpec((1, bn), lambda i: (0, i)),       # lane-dense row
        ),
        compiler_params=pltpu.CompilerParams(
            dimension_semantics=("parallel",),        # shard batch steps on v7x TCs
            vmem_limit_bytes=32 * 1024 * 1024),       # explicit; safe on v5e/v6e/v7x
    )(scal, x1p, x2p, x3p, asm_cols)
    return out[0, :N]


def tl_nn3_reference(x1, x2, x3, params):
    """Pure-JAX reference mirroring the PyTorch TL_NN3 forward exactly."""
    t, b, A = params["t"], params["b"], params["A"]
    A4, betas = params["A4"], params["betas"]

    def branch(x, i):
        r = jax.nn.sigmoid(x.astype(jnp.float32) * t[i] - b[i])
        A_sm = jax.nn.softmax(A[i])
        wb = betas[i] - jnp.sum(A_sm[None, :] * (1.0 - r), axis=1)
        return jnp.clip(wb, 0.0, 1.0).reshape(-1, 1)

    a1, a2, a3 = branch(x1, 0), branch(x2, 1), branch(x3, 2)
    r4 = jnp.concatenate([a1, a2, a3], axis=1)
    A4_sm = jax.nn.softmax(A4)
    wb4 = betas[3] - jnp.sum(A4_sm[None, :] * (1.0 - r4), axis=1)
    return jnp.clip(wb4, 0.0, 1.0).reshape(-1)


def init_params(key, T):
    # Matches torch init: t ~ 1e-5*randn, b ~ randn, A ~ U[0,1), A4 ~ U[0,1),
    # betas = 1.0.  (t*_2 params are unused in forward, as in torch.)
    ks = jax.random.split(key, 4)
    return {
        "t": 1e-5 * jax.random.normal(ks[0], (3,), dtype=jnp.float32),
        "b": jax.random.normal(ks[1], (3,), dtype=jnp.float32),
        "A": jax.random.uniform(ks[2], (3, T), dtype=jnp.float32),
        "A4": jax.random.uniform(ks[3], (3,), dtype=jnp.float32),
        "betas": jnp.ones((4,), dtype=jnp.float32),
    }


if __name__ == "__main__":
    key = jax.random.PRNGKey(0)
    k_p, k1, k2, k3 = jax.random.split(key, 4)

    N, T = 4096, 16   # -> block_n=1024, grid=4 (>=2 pipelined steps per v7x TC)
    params = init_params(k_p, T)
    x1 = jax.random.normal(k1, (N, T), dtype=jnp.float32)
    x2 = jax.random.normal(k2, (N, T), dtype=jnp.float32)
    x3 = jax.random.normal(k3, (N, T), dtype=jnp.float32)

    out = jax.block_until_ready(tl_nn3_forward(x1, x2, x3, params))
    ref = tl_nn3_reference(x1, x2, x3, params)
    assert out.shape == (N,)
    assert jnp.allclose(out, ref, atol=5e-5, rtol=5e-5), \
        float(jnp.max(jnp.abs(out - ref)))

    # exercise the non-multiple-of-128 padding fallback on a small slice
    M = 300
    out2 = jax.block_until_ready(
        tl_nn3_forward(x1[:M], x2[:M], x3[:M], params))
    ref2 = tl_nn3_reference(x1[:M], x2[:M], x3[:M], params)
    assert out2.shape == (M,)
    assert jnp.allclose(out2, ref2, atol=5e-5, rtol=5e-5), \
        float(jnp.max(jnp.abs(out2 - ref2)))

    print("KERNEL_OK")
</pallas_src>

<mosaic_0001>
module attributes {stable_mosaic.version = 11 : i64} {
  func.func @tl_nn3_kernel(%arg0: i32, %arg1: memref<13xf32, #tpu.memory_space<smem>>, %arg2: memref<1024x16xf32, #tpu.memory_space<vmem>>, %arg3: memref<1024x16xf32, #tpu.memory_space<vmem>>, %arg4: memref<1024x16xf32, #tpu.memory_space<vmem>>, %arg5: memref<3x16x1xf32, #tpu.memory_space<vmem>>, %arg6: memref<1x1024xf32, #tpu.memory_space<vmem>>) attributes {dimension_semantics = [#tpu.dimension_semantics<parallel>], iteration_bounds = array<i64: 4>, scalar_prefetch = 0 : i64, scratch_operands = 0 : i64, tpu.core_type = #tpu.core_type<tc>, window_params = [{transform_indices = @transform_0, window_bounds = array<i64: 13>}, {transform_indices = @transform_1, window_bounds = array<i64: 1024, 16>}, {transform_indices = @transform_2, window_bounds = array<i64: 1024, 16>}, {transform_indices = @transform_3, window_bounds = array<i64: 1024, 16>}, {pipeline_mode = #tpu.pipeline_mode<synchronous>, transform_indices = @transform_4, window_bounds = array<i64: 3, 16, 1>}, {transform_indices = @transform_5, window_bounds = array<i64: 1, 1024>}]} {
    %c12 = arith.constant 12 : index
    %0 = memref.load %arg1[%c12] : memref<13xf32, #tpu.memory_space<smem>>
    %1 = vector.broadcast %0 : f32 to vector<1x1024xf32>
    %c0 = arith.constant 0 : index
    %c0_0 = arith.constant 0 : index
    %2 = vector.load %arg2[%c0, %c0_0] : memref<1024x16xf32, #tpu.memory_space<vmem>>, vector<1024x16xf32>
    %3 = tpu.transpose %2, [1, 0] : vector<1024x16xf32> -> vector<16x1024xf32>
    %c0_1 = arith.constant 0 : index
    %4 = memref.load %arg1[%c0_1] : memref<13xf32, #tpu.memory_space<smem>>
    %5 = vector.broadcast %4 : f32 to vector<16x1024xf32>
    %6 = arith.mulf %3, %5 : vector<16x1024xf32>
    %c3 = arith.constant 3 : index
    %7 = memref.load %arg1[%c3] : memref<13xf32, #tpu.memory_space<smem>>
    %8 = vector.broadcast %7 : f32 to vector<16x1024xf32>
    %9 = arith.subf %6, %8 : vector<16x1024xf32>
    %10 = math.tanh %9 : vector<16x1024xf32>
    %c6 = arith.constant 6 : index
    %11 = memref.load %arg1[%c6] : memref<13xf32, #tpu.memory_space<smem>>
    %c0_2 = arith.constant 0 : index
    %c0_3 = arith.constant 0 : index
    %c0_4 = arith.constant 0 : index
    %12 = vector.load %arg5[%c0_2, %c0_3, %c0_4] : memref<3x16x1xf32, #tpu.memory_space<vmem>>, vector<1x16x1xf32>
    %13 = vector.shape_cast %12 : vector<1x16x1xf32> to vector<16x1xf32>
    %14 = vector.broadcast %13 : vector<16x1xf32> to vector<16x1024xf32>
    %15 = arith.mulf %14, %10 : vector<16x1024xf32>
    %cst = arith.constant dense<0.000000e+00> : vector<1024xf32>
    %16 = vector.multi_reduction <add>, %15, %cst [0] : vector<16x1024xf32> to vector<1024xf32>
    %17 = vector.shape_cast %16 : vector<1024xf32> to vector<1x1024xf32>
    %18 = vector.broadcast %11 : f32 to vector<1x1024xf32>
    %19 = arith.addf %18, %17 : vector<1x1024xf32>
    %cst_5 = arith.constant 1.000000e+00 : f32
    %20 = vector.broadcast %cst_5 : f32 to vector<1x1024xf32>
    %21 = arith.minimumf %20, %19 : vector<1x1024xf32>
    %cst_6 = arith.constant 0.000000e+00 : f32
    %22 = vector.broadcast %cst_6 : f32 to vector<1x1024xf32>
    %23 = arith.maximumf %22, %21 : vector<1x1024xf32>
    %c9 = arith.constant 9 : index
    %24 = memref.load %arg1[%c9] : memref<13xf32, #tpu.memory_space<smem>>
    %25 = vector.broadcast %24 : f32 to vector<1x1024xf32>
    %26 = arith.mulf %25, %23 : vector<1x1024xf32>
    %27 = arith.addf %1, %26 : vector<1x1024xf32>
    %c0_7 = arith.constant 0 : index
    %c0_8 = arith.constant 0 : index
    %28 = vector.load %arg3[%c0_7, %c0_8] : memref<1024x16xf32, #tpu.memory_space<vmem>>, vector<1024x16xf32>
    %29 = tpu.transpose %28, [1, 0] : vector<1024x16xf32> -> vector<16x1024xf32>
    %c1 = arith.constant 1 : index
    %30 = memref.load %arg1[%c1] : memref<13xf32, #tpu.memory_space<smem>>
    %31 = vector.broadcast %30 : f32 to vector<16x1024xf32>
    %32 = arith.mulf %29, %31 : vector<16x1024xf32>
    %c4 = arith.constant 4 : index
    %33 = memref.load %arg1[%c4] : memref<13xf32, #tpu.memory_space<smem>>
    %34 = vector.broadcast %33 : f32 to vector<16x1024xf32>
    %35 = arith.subf %32, %34 : vector<16x1024xf32>
    %36 = math.tanh %35 : vector<16x1024xf32>
    %c7 = arith.constant 7 : index
    %37 = memref.load %arg1[%c7] : memref<13xf32, #tpu.memory_space<smem>>
    %c1_9 = arith.constant 1 : index
    %c0_10 = arith.constant 0 : index
    %c0_11 = arith.constant 0 : index
    %38 = vector.load %arg5[%c1_9, %c0_10, %c0_11] : memref<3x16x1xf32, #tpu.memory_space<vmem>>, vector<1x16x1xf32>
    %39 = vector.shape_cast %38 : vector<1x16x1xf32> to vector<16x1xf32>
    %40 = vector.broadcast %39 : vector<16x1xf32> to vector<16x1024xf32>
    %41 = arith.mulf %40, %36 : vector<16x1024xf32>
    %cst_12 = arith.constant dense<0.000000e+00> : vector<1024xf32>
    %42 = vector.multi_reduction <add>, %41, %cst_12 [0] : vector<16x1024xf32> to vector<1024xf32>
    %43 = vector.shape_cast %42 : vector<1024xf32> to vector<1x1024xf32>
    %44 = vector.broadcast %37 : f32 to vector<1x1024xf32>
    %45 = arith.addf %44, %43 : vector<1x1024xf32>
    %cst_13 = arith.constant 1.000000e+00 : f32
    %46 = vector.broadcast %cst_13 : f32 to vector<1x1024xf32>
    %47 = arith.minimumf %46, %45 : vector<1x1024xf32>
    %cst_14 = arith.constant 0.000000e+00 : f32
    %48 = vector.broadcast %cst_14 : f32 to vector<1x1024xf32>
    %49 = arith.maximumf %48, %47 : vector<1x1024xf32>
    %c10 = arith.constant 10 : index
    %50 = memref.load %arg1[%c10] : memref<13xf32, #tpu.memory_space<smem>>
    %51 = vector.broadcast %50 : f32 to vector<1x1024xf32>
    %52 = arith.mulf %51, %49 : vector<1x1024xf32>
    %53 = arith.addf %27, %52 : vector<1x1024xf32>
    %c0_15 = arith.constant 0 : index
    %c0_16 = arith.constant 0 : index
    %54 = vector.load %arg4[%c0_15, %c0_16] : memref<1024x16xf32, #tpu.memory_space<vmem>>, vector<1024x16xf32>
    %55 = tpu.transpose %54, [1, 0] : vector<1024x16xf32> -> vector<16x1024xf32>
    %c2 = arith.constant 2 : index
    %56 = memref.load %arg1[%c2] : memref<13xf32, #tpu.memory_space<smem>>
    %57 = vector.broadcast %56 : f32 to vector<16x1024xf32>
    %58 = arith.mulf %55, %57 : vector<16x1024xf32>
    %c5 = arith.constant 5 : index
    %59 = memref.load %arg1[%c5] : memref<13xf32, #tpu.memory_space<smem>>
    %60 = vector.broadcast %59 : f32 to vector<16x1024xf32>
    %61 = arith.subf %58, %60 : vector<16x1024xf32>
    %62 = math.tanh %61 : vector<16x1024xf32>
    %c8 = arith.constant 8 : index
    %63 = memref.load %arg1[%c8] : memref<13xf32, #tpu.memory_space<smem>>
    %c2_17 = arith.constant 2 : index
    %c0_18 = arith.constant 0 : index
    %c0_19 = arith.constant 0 : index
    %64 = vector.load %arg5[%c2_17, %c0_18, %c0_19] : memref<3x16x1xf32, #tpu.memory_space<vmem>>, vector<1x16x1xf32>
    %65 = vector.shape_cast %64 : vector<1x16x1xf32> to vector<16x1xf32>
    %66 = vector.broadcast %65 : vector<16x1xf32> to vector<16x1024xf32>
    %67 = arith.mulf %66, %62 : vector<16x1024xf32>
    %cst_20 = arith.constant dense<0.000000e+00> : vector<1024xf32>
    %68 = vector.multi_reduction <add>, %67, %cst_20 [0] : vector<16x1024xf32> to vector<1024xf32>
    %69 = vector.shape_cast %68 : vector<1024xf32> to vector<1x1024xf32>
    %70 = vector.broadcast %63 : f32 to vector<1x1024xf32>
    %71 = arith.addf %70, %69 : vector<1x1024xf32>
    %cst_21 = arith.constant 1.000000e+00 : f32
    %72 = vector.broadcast %cst_21 : f32 to vector<1x1024xf32>
    %73 = arith.minimumf %72, %71 : vector<1x1024xf32>
    %cst_22 = arith.constant 0.000000e+00 : f32
    %74 = vector.broadcast %cst_22 : f32 to vector<1x1024xf32>
    %75 = arith.maximumf %74, %73 : vector<1x1024xf32>
    %c11 = arith.constant 11 : index
    %76 = memref.load %arg1[%c11] : memref<13xf32, #tpu.memory_space<smem>>
    %77 = vector.broadcast %76 : f32 to vector<1x1024xf32>
    %78 = arith.mulf %77, %75 : vector<1x1024xf32>
    %79 = arith.addf %53, %78 : vector<1x1024xf32>
    %cst_23 = arith.constant 1.000000e+00 : f32
    %80 = vector.broadcast %cst_23 : f32 to vector<1x1024xf32>
    %81 = arith.minimumf %80, %79 : vector<1x1024xf32>
    %cst_24 = arith.constant 0.000000e+00 : f32
    %82 = vector.broadcast %cst_24 : f32 to vector<1x1024xf32>
    %83 = arith.maximumf %82, %81 : vector<1x1024xf32>
    %c0_25 = arith.constant 0 : index
    %c0_26 = arith.constant 0 : index
    %84 = vector.load %arg6[%c0_25, %c0_26] : memref<1x1024xf32, #tpu.memory_space<vmem>>, vector<1x1024xf32>
    tpu.vector_store %arg6[%c0_25, %c0_26], %83 {strides = array<i32>} : memref<1x1024xf32, #tpu.memory_space<vmem>>, vector<1x1024xf32>,
    return
  }
  func.func @transform_0(%arg0: i32) -> i32 {
    %c0_i32 = arith.constant 0 : i32
    %c0_i32_0 = arith.constant 0 : i32
    return %c0_i32 : i32
  }
  func.func @transform_1(%arg0: i32) -> (i32, i32) {
    %c0_i32 = arith.constant 0 : i32
    %c0_i32_0 = arith.constant 0 : i32
    return %arg0, %c0_i32 : i32, i32
  }
  func.func @transform_2(%arg0: i32) -> (i32, i32) {
    %c0_i32 = arith.constant 0 : i32
    %c0_i32_0 = arith.constant 0 : i32
    return %arg0, %c0_i32 : i32, i32
  }
  func.func @transform_3(%arg0: i32) -> (i32, i32) {
    %c0_i32 = arith.constant 0 : i32
    %c0_i32_0 = arith.constant 0 : i32
    return %arg0, %c0_i32 : i32, i32
  }
  func.func @transform_4(%arg0: i32) -> (i32, i32, i32) {
    %c0_i32 = arith.constant 0 : i32
    %c0_i32_0 = arith.constant 0 : i32
    %c0_i32_1 = arith.constant 0 : i32
    %c0_i32_2 = arith.constant 0 : i32
    return %c0_i32, %c0_i32_0, %c0_i32_1 : i32, i32, i32
  }
  func.func @transform_5(%arg0: i32) -> (i32, i32) {
    %c0_i32 = arith.constant 0 : i32
    %c0_i32_0 = arith.constant 0 : i32
    return %c0_i32, %arg0 : i32, i32
  }
}

</mosaic_0001>

<llo_original>
// kernel: tpu_custom_call.1
$region0: #{tpu_custom_call.1}
  #allocation0 [shape = 'u32[]', space=smem, size = 0x4, offset = 0x4, fixed_abs, tag = 'smem constant byte address 0x4 - core index']
  #allocation1 [shape = 'u32[144,128]{1,0:T(1,128)}', space=vmem, size = 0x12000, scoped, tag = 'internal scratch']
  %s0 = inlined_call_operand.vmem [shape: f32[13], index: 0, kind: input, shape index: {}]
  %s1 = inlined_call_operand.vmem [shape: f32[4096,16], index: 1, kind: input, shape index: {}]
  %s2 = inlined_call_operand.vmem [shape: f32[4096,16], index: 2, kind: input, shape index: {}]
  %s3 = inlined_call_operand.vmem [shape: f32[4096,16], index: 3, kind: input, shape index: {}]
  %s4 = inlined_call_operand.vmem [shape: f32[3,16,1], index: 4, kind: input, shape index: {}]
  %s5 = inlined_call_operand.hbm [shape: f32[1,4096], index: 5, kind: output, shape index: {}]
  %s6 = sld [smem:[#allocation0]]
  $region57: #{tpu_custom_call.1} parent=0
    _
  %s8 = ssub.s32 1, %s6
  %s9 = scalar_select 0, %s8, %s6
  $region1: #{tpu_custom_call.1} parent=0
    #allocation2 [shape = 'u8[512]{0}', space=smem, size = 0x200, scoped, tag = 'input window, operand 0, single buffered']
    #allocation3 [shape = 's32[2]{0}', space=sflag, size = 0x8, scoped, tag = 'scoped memory for tpu_custom_call.1']
    #allocation4 [shape = 's32[2]{0}', space=sflag, size = 0x8, scoped, tag = 'scoped memory for tpu_custom_call.1']
    #allocation5 [shape = 'u8[8192]{0}', space=vmem, size = 0x2000, scoped, tag = 'output window, operand 0']
    %10 = vsyncpa [#allocation4], 0
    %11 = vsyncpa [#allocation3], 0
    %s12 = scalar_lea.sflag [#allocation3], 1
    %13 = vsyncpa %s12, 0
    loop: start=0, step=1, limit=6
    $region2: #{tpu_custom_call.1} parent=1 // loop_pre_header
      _
    $region3: #{tpu_custom_call.1} parent=1 // loop_header
      %s15 = sphi 0, %s19
      %p16 = scmp.ge.s32.totalorder %s15, 6
      %s23 = sphi 0, %s23
      %s25 = sphi 0, %s23
      %s26 = sphi 0, %s25
      %s40 = sphi 0, %s26
      %s46 = sphi 0, %s48
      %s49 = sphi 0, %s46
      %s50 = sphi 0, %s49
      %s66 = sphi 0, %s50
      %s72 = sphi 0, %s74
      %s75 = sphi 0, %s72
      %s76 = sphi 0, %s75
      %s92 = sphi 0, %s76
      %s98 = sphi 0, %s100
      %s101 = sphi 0, %s98
      %s102 = sphi 0, %s101
      %s118 = sphi 0, %s102
      %s122 = sphi 0, %s122
      %s124 = sphi 0, %s122
      %s125 = sphi 0, %s124
      %s139 = sphi 0, %s125
      %s145 = sphi 0, %s147
      %s148 = sphi 0, %s145
      %s149 = sphi 0, %s148
      %s165 = sphi 0, %s149
    $region4: #{tpu_custom_call.1} parent=1 // loop_header_branch
      %18 = sbr.rel (%p16) target = $region8
    $region5: #{tpu_custom_call.1} parent=1 // loop_body
      %s20 = ssub.s32 %s15, 1
      %s21 = ssub.s32 %s15, 2
      %s22 = sadd.s32 %s15, 1
      %s24 = sadd.s32 %s23, 1
      %p27 = scmp.eq.s32.totalorder %s15, 3
      %p28 = scmp.ne.s32.totalorder %s23, %s25
      %p29 = scmp.eq.s32.totalorder %s15, 0
      %p30 = por %p28, %p29
      %p31 = scmp.ne.s32.totalorder %s23, %s25
      %p32 = scmp.eq.s32.totalorder %s20, 3
      %p33 = por %p31, %p32
      %p34 = scmp.ne.s32.totalorder %s25, %s26
      %p35 = scmp.eq.s32.totalorder %s20, 0
      %p36 = por %p34, %p35
      %p37 = scmp.ne.s32.totalorder %s25, %s26
      %p38 = scmp.eq.s32.totalorder %s21, 3
      %p39 = por %p37, %p38
      %p41 = scmp.ne.s32.totalorder %s26, %s40
      %p42 = scmp.eq.s32.totalorder %s21, 0
      %p43 = por %p41, %p42
      %s44 = ssub.s32 %s15, %s22
      %p45 = scmp.eq.s32.totalorder %s44, 0
      %s47 = sadd.s32 %s46, 1
      %s48 = scalar_select %p45, %s46, %s47
      %p51 = pneg %p45
      %p52 = scmp.eq.s32.totalorder %s15, 3
      %p53 = por %p51, %p52
      %p54 = scmp.ne.s32.totalorder %s46, %s49
      %p55 = scmp.eq.s32.totalorder %s15, 0
      %p56 = por %p54, %p55
      %p57 = scmp.ne.s32.totalorder %s46, %s49
      %p58 = scmp.eq.s32.totalorder %s20, 3
      %p59 = por %p57, %p58
      %p60 = scmp.ne.s32.totalorder %s49, %s50
      %p61 = scmp.eq.s32.totalorder %s20, 0
      %p62 = por %p60, %p61
      %p63 = scmp.ne.s32.totalorder %s49, %s50
      %p64 = scmp.eq.s32.totalorder %s21, 3
      %p65 = por %p63, %p64
      %p67 = scmp.ne.s32.totalorder %s50, %s66
      %p68 = scmp.eq.s32.totalorder %s21, 0
      %p69 = por %p67, %p68
      %s70 = ssub.s32 %s15, %s22
      %p71 = scmp.eq.s32.totalorder %s70, 0
      %s73 = sadd.s32 %s72, 1
      %s74 = scalar_select %p71, %s72, %s73
      %p77 = pneg %p71
      %p78 = scmp.eq.s32.totalorder %s15, 3
      %p79 = por %p77, %p78
      %p80 = scmp.ne.s32.totalorder %s72, %s75
      %p81 = scmp.eq.s32.totalorder %s15, 0
      %p82 = por %p80, %p81
      %p83 = scmp.ne.s32.totalorder %s72, %s75
      %p84 = scmp.eq.s32.totalorder %s20, 3
      %p85 = por %p83, %p84
      %p86 = scmp.ne.s32.totalorder %s75, %s76
      %p87 = scmp.eq.s32.totalorder %s20, 0
      %p88 = por %p86, %p87
      %p89 = scmp.ne.s32.totalorder %s75, %s76
      %p90 = scmp.eq.s32.totalorder %s21, 3
      %p91 = por %p89, %p90
      %p93 = scmp.ne.s32.totalorder %s76, %s92
      %p94 = scmp.eq.s32.totalorder %s21, 0
      %p95 = por %p93, %p94
      %s96 = ssub.s32 %s15, %s22
      %p97 = scmp.eq.s32.totalorder %s96, 0
      %s99 = sadd.s32 %s98, 1
      %s100 = scalar_select %p97, %s98, %s99
      %p103 = pneg %p97
      %p104 = scmp.eq.s32.totalorder %s15, 3
      %p105 = por %p103, %p104
      %p106 = scmp.ne.s32.totalorder %s98, %s101
      %p107 = scmp.eq.s32.totalorder %s15, 0
      %p108 = por %p106, %p107
      %p109 = scmp.ne.s32.totalorder %s98, %s101
      %p110 = scmp.eq.s32.totalorder %s20, 3
      %p111 = por %p109, %p110
      %p112 = scmp.ne.s32.totalorder %s101, %s102
      %p113 = scmp.eq.s32.totalorder %s20, 0
      %p114 = por %p112, %p113
      %p115 = scmp.ne.s32.totalorder %s101, %s102
      %p116 = scmp.eq.s32.totalorder %s21, 3
      %p117 = por %p115, %p116
      %p119 = scmp.ne.s32.totalorder %s102, %s118
      %p120 = scmp.eq.s32.totalorder %s21, 0
      %p121 = por %p119, %p120
      %s123 = sadd.s32 %s122, 1
      %p126 = scmp.eq.s32.totalorder %s15, 3
      %p127 = scmp.ne.s32.totalorder %s122, %s124
      %p128 = scmp.eq.s32.totalorder %s15, 0
      %p129 = por %p127, %p128
      %p130 = scmp.ne.s32.totalorder %s122, %s124
      %p131 = scmp.eq.s32.totalorder %s20, 3
      %p132 = por %p130, %p131
      %p133 = scmp.ne.s32.totalorder %s124, %s125
      %p134 = scmp.eq.s32.totalorder %s20, 0
      %p135 = por %p133, %p134
      %p136 = scmp.ne.s32.totalorder %s124, %s125
      %p137 = scmp.eq.s32.totalorder %s21, 3
      %p138 = por %p136, %p137
      %p140 = scmp.ne.s32.totalorder %s125, %s139
      %p141 = scmp.eq.s32.totalorder %s21, 0
      %p142 = por %p140, %p141
      %s143 = ssub.s32 %s15, %s22
      %p144 = scmp.eq.s32.totalorder %s143, 0
      %s146 = sadd.s32 %s145, 1
      %s147 = scalar_select %p144, %s145, %s146
      %p150 = pneg %p144
      %p151 = scmp.eq.s32.totalorder %s15, 3
      %p152 = por %p150, %p151
      %p153 = scmp.ne.s32.totalorder %s145, %s148
      %p154 = scmp.eq.s32.totalorder %s15, 0
      %p155 = por %p153, %p154
      %p156 = scmp.ne.s32.totalorder %s145, %s148
      %p157 = scmp.eq.s32.totalorder %s20, 3
      %p158 = por %p156, %p157
      %p159 = scmp.ne.s32.totalorder %s148, %s149
      %p160 = scmp.eq.s32.totalorder %s20, 0
      %p161 = por %p159, %p160
      %p162 = scmp.ne.s32.totalorder %s148, %s149
      %p163 = scmp.eq.s32.totalorder %s21, 3
      %p164 = por %p162, %p163
      %p166 = scmp.ne.s32.totalorder %s149, %s165
      %p167 = scmp.eq.s32.totalorder %s21, 0
      %p168 = por %p166, %p167
      %p169 = scmp.le.s32.totalorder 1, %s15
      %p170 = scmp.lt.s32.totalorder %s15, 5
      %p171 = pnand %p169, %p170
      %p172 = pneg %p171
      // Predicated region
      $region9: #{tpu_custom_call.1} parent=5 // pred_check
        _
      $region10: #{tpu_custom_call.1} parent=5 // pred_check_branch
        %174 = sbr.rel (%p171) target = $region12
      $region11: #{tpu_custom_call.1} parent=5 // pred_region
        %s175 = ssub.s32 %s15, 1
        // Predicated region
        $region13: #{tpu_custom_call.1} parent=11 // pred_check
          %p176 = pneg %p36
        $region14: #{tpu_custom_call.1} parent=11 // pred_check_branch
          %178 = sbr.rel (%p176) target = $region16
        $region15: #{tpu_custom_call.1} parent=11 // pred_region
          %s180 = ssub.s32 16, 16
          %181 = vsyncadd [#allocation4], %s180
          %s183 = sshll.u32 %s0, 4
          %s184 = int_to_ptr.vmem [resolvable:$true] %s183
          %186 = dma.vmem_to_smem %s184, 16, [#allocation2], [#allocation4]
        $region16: #{tpu_custom_call.1} parent=11 // pred_fallthru
          _
        // Predicated region
        $region17: #{tpu_custom_call.1} parent=11 // pred_check
          %p187 = pneg %p135
        $region18: #{tpu_custom_call.1} parent=11 // pred_check_branch
          %189 = sbr.rel (%p187) target = $region20
        $region19: #{tpu_custom_call.1} parent=11 // pred_region
          _
        $region20: #{tpu_custom_call.1} parent=11 // pred_fallthru
          _
      $region12: #{tpu_custom_call.1} parent=5 // pred_fallthru
        _
      %p190 = scmp.lt.s32.totalorder %s15, 4
      // Predicated region
      $region21: #{tpu_custom_call.1} parent=5 // pred_check
        %p191 = pneg %p190
      $region22: #{tpu_custom_call.1} parent=5 // pred_check_branch
        %193 = sbr.rel (%p191) target = $region24
      $region23: #{tpu_custom_call.1} parent=5 // pred_region
        // Predicated region
        $region25: #{tpu_custom_call.1} parent=23 // pred_check
          %p194 = pneg %p56
        $region26: #{tpu_custom_call.1} parent=23 // pred_check_branch
          %196 = sbr.rel (%p194) target = $region28
        $region27: #{tpu_custom_call.1} parent=23 // pred_region
          %s197 = smul.u32 128, %s15
          %p198 = scmp.lt.s32.totalorder %s197, 511
          %s199 = scalar_select %p198, %s197, 511
          %s200 = smul.addr %s199, 8
          %s201 = scalar_lea.vmem %s1, %s200
          %s202 = smul.u32 128, %s15
        $region28: #{tpu_custom_call.1} parent=23 // pred_fallthru
          _
        // Predicated region
        $region29: #{tpu_custom_call.1} parent=23 // pred_check
          %p203 = pneg %p82
        $region30: #{tpu_custom_call.1} parent=23 // pred_check_branch
          %205 = sbr.rel (%p203) target = $region32
        $region31: #{tpu_custom_call.1} parent=23 // pred_region
          %s206 = smul.u32 128, %s15
          %p207 = scmp.lt.s32.totalorder %s206, 511
          %s208 = scalar_select %p207, %s206, 511
          %s209 = smul.addr %s208, 8
          %s210 = scalar_lea.vmem %s2, %s209
          %s211 = smul.u32 128, %s15
        $region32: #{tpu_custom_call.1} parent=23 // pred_fallthru
          _
        // Predicated region
        $region33: #{tpu_custom_call.1} parent=23 // pred_check
          %p212 = pneg %p108
        $region34: #{tpu_custom_call.1} parent=23 // pred_check_branch
          %214 = sbr.rel (%p212) target = $region36
        $region35: #{tpu_custom_call.1} parent=23 // pred_region
          %s215 = smul.u32 128, %s15
          %p216 = scmp.lt.s32.totalorder %s215, 511
          %s217 = scalar_select %p216, %s215, 511
          %s218 = smul.addr %s217, 8
          %s219 = scalar_lea.vmem %s3, %s218
          %s220 = smul.u32 128, %s15
        $region36: #{tpu_custom_call.1} parent=23 // pred_fallthru
          _
      $region24: #{tpu_custom_call.1} parent=5 // pred_fallthru
        _
      %p221 = scmp.le.s32.totalorder 1, %s15
      %p222 = scmp.lt.s32.totalorder %s15, 5
      %p223 = pnand %p221, %p222
      %p224 = pneg %p223
      // Predicated region
      $region37: #{tpu_custom_call.1} parent=5 // pred_check
        _
      $region38: #{tpu_custom_call.1} parent=5 // pred_check_branch
        %226 = sbr.rel (%p223) target = $region40
      $region39: #{tpu_custom_call.1} parent=5 // pred_region
        %s227 = ssub.s32 %s15, 1
        // Predicated region
        $region41: #{tpu_custom_call.1} parent=39 // pred_check
          %p228 = pneg %p36
        $region42: #{tpu_custom_call.1} parent=39 // pred_check_branch
          %230 = sbr.rel (%p228) target = $region44
        $region43: #{tpu_custom_call.1} parent=39 // pred_region
          %231 = dma.done [#allocation4], 16
        $region44: #{tpu_custom_call.1} parent=39 // pred_fallthru
          _
        %232 = sfence
        %p233 = pneg %p36
        %p234 = pneg %p33
        %s235 = smul.u32 128, %s20
        %p236 = scmp.lt.s32.totalorder %s235, 511
        %s237 = scalar_select %p236, %s235, 511
        %s238 = smul.addr %s237, 8
        %s239 = scalar_lea.vmem %s1, %s238
        %p240 = pneg %p62
        %p241 = pneg %p59
        %s242 = smul.u32 128, %s20
        %p243 = scmp.lt.s32.totalorder %s242, 511
        %s244 = scalar_select %p243, %s242, 511
        %s245 = smul.addr %s244, 8
        %s246 = scalar_lea.vmem %s2, %s245
        %p247 = pneg %p88
        %p248 = pneg %p85
        %s249 = smul.u32 128, %s20
        %p250 = scmp.lt.s32.totalorder %s249, 511
        %s251 = scalar_select %p250, %s249, 511
        %s252 = smul.addr %s251, 8
        %s253 = scalar_lea.vmem %s3, %s252
        %p254 = pneg %p114
        %p255 = pneg %p111
        %p256 = pneg %p135
        %p257 = pneg %p132
        %p258 = pneg %p161
        %p259 = pneg %p158
        %s260 = sand.u32 %s148, 1
        %s261 = scalar_lea.sflag [#allocation3], %s260
        %s262 = sand.u32 %s148, 1
        %s263 = smul.addr %s262, 8
        %s264 = scalar_lea.vmem [#allocation5], %s263
        %s265 = smul.u32 128, %s20
        %p266 = scmp.lt.s32.totalorder %s265, 511
        %s267 = scalar_select %p266, %s265, 511
        %s268 = smul.addr %s267, 8
        %s269 = scalar_lea.vmem %s1, %s268
        %s270 = smul.u32 128, %s20
        %s271 = smul.u32 128, %s20
        %p272 = scmp.lt.s32.totalorder %s271, 511
        %s273 = scalar_select %p272, %s271, 511
        %s274 = smul.addr %s273, 8
        %s275 = scalar_lea.vmem %s2, %s274
        %s276 = smul.u32 128, %s20
        %s277 = smul.u32 128, %s20
        %p278 = scmp.lt.s32.totalorder %s277, 511
        %s279 = scalar_select %p278, %s277, 511
        %s280 = smul.addr %s279, 8
        %s281 = scalar_lea.vmem %s3, %s280
        %s282 = smul.u32 128, %s20
        %s283 = smul.u32 8, %s20
        %s284 = sld [smem:[#allocation2 + $0xc]]
        %v285 = vstv %s284
        %v286 = vld [vmem:[%s269] sm:$0xff]
        %v287 = vld [vmem:[%s269 + $0x8] sm:$0xff]
        %v288 = vld [vmem:[%s269 + $0x10] sm:$0xff]
        %v289 = vld [vmem:[%s269 + $0x18] sm:$0xff]
        %v290 = vld [vmem:[%s269 + $0x20] sm:$0xff]
        %v291 = vld [vmem:[%s269 + $0x28] sm:$0xff]
        %v292 = vld [vmem:[%s269 + $0x30] sm:$0xff]
        %v293 = vld [vmem:[%s269 + $0x38] sm:$0xff]
        %v294 = vld [vmem:[%s269 + $0x40] sm:$0xff]
        %v295 = vld [vmem:[%s269 + $0x48] sm:$0xff]
        %v296 = vld [vmem:[%s269 + $0x50] sm:$0xff]
        %v297 = vld [vmem:[%s269 + $0x58] sm:$0xff]
        %v298 = vld [vmem:[%s269 + $0x60] sm:$0xff]
        %v299 = vld [vmem:[%s269 + $0x68] sm:$0xff]
        %v300 = vld [vmem:[%s269 + $0x70] sm:$0xff]
        %v301 = vld [vmem:[%s269 + $0x78] sm:$0xff]
        %v302 = vld [vmem:[%s269 + $0x80] sm:$0xff]
        %v303 = vld [vmem:[%s269 + $0x88] sm:$0xff]
        %v304 = vld [vmem:[%s269 + $0x90] sm:$0xff]
        %v305 = vld [vmem:[%s269 + $0x98] sm:$0xff]
        %v306 = vld [vmem:[%s269 + $0xa0] sm:$0xff]
        %v307 = vld [vmem:[%s269 + $0xa8] sm:$0xff]
        %v308 = vld [vmem:[%s269 + $0xb0] sm:$0xff]
        %v309 = vld [vmem:[%s269 + $0xb8] sm:$0xff]
        %v310 = vld [vmem:[%s269 + $0xc0] sm:$0xff]
        %v311 = vld [vmem:[%s269 + $0xc8] sm:$0xff]
        %v312 = vld [vmem:[%s269 + $0xd0] sm:$0xff]
        %v313 = vld [vmem:[%s269 + $0xd8] sm:$0xff]
        %v314 = vld [vmem:[%s269 + $0xe0] sm:$0xff]
        %v315 = vld [vmem:[%s269 + $0xe8] sm:$0xff]
        %v316 = vld [vmem:[%s269 + $0xf0] sm:$0xff]
        %v317 = vld [vmem:[%s269 + $0xf8] sm:$0xff]
        %v318 = vld [vmem:[%s269 + $0x100] sm:$0xff]
        %v319 = vld [vmem:[%s269 + $0x108] sm:$0xff]
        %v320 = vld [vmem:[%s269 + $0x110] sm:$0xff]
        %v321 = vld [vmem:[%s269 + $0x118] sm:$0xff]
        %v322 = vld [vmem:[%s269 + $0x120] sm:$0xff]
        %v323 = vld [vmem:[%s269 + $0x128] sm:$0xff]
        %v324 = vld [vmem:[%s269 + $0x130] sm:$0xff]
        %v325 = vld [vmem:[%s269 + $0x138] sm:$0xff]
        %v326 = vld [vmem:[%s269 + $0x140] sm:$0xff]
        %v327 = vld [vmem:[%s269 + $0x148] sm:$0xff]
        %v328 = vld [vmem:[%s269 + $0x150] sm:$0xff]
        %v329 = vld [vmem:[%s269 + $0x158] sm:$0xff]
        %v330 = vld [vmem:[%s269 + $0x160] sm:$0xff]
        %v331 = vld [vmem:[%s269 + $0x168] sm:$0xff]
        %v332 = vld [vmem:[%s269 + $0x170] sm:$0xff]
        %v333 = vld [vmem:[%s269 + $0x178] sm:$0xff]
        %v334 = vld [vmem:[%s269 + $0x180] sm:$0xff]
        %v335 = vld [vmem:[%s269 + $0x188] sm:$0xff]
        %v336 = vld [vmem:[%s269 + $0x190] sm:$0xff]
        %v337 = vld [vmem:[%s269 + $0x198] sm:$0xff]
        %v338 = vld [vmem:[%s269 + $0x1a0] sm:$0xff]
        %v339 = vld [vmem:[%s269 + $0x1a8] sm:$0xff]
        %v340 = vld [vmem:[%s269 + $0x1b0] sm:$0xff]
        %v341 = vld [vmem:[%s269 + $0x1b8] sm:$0xff]
        %v342 = vld [vmem:[%s269 + $0x1c0] sm:$0xff]
        %v343 = vld [vmem:[%s269 + $0x1c8] sm:$0xff]
        %v344 = vld [vmem:[%s269 + $0x1d0] sm:$0xff]
        %v345 = vld [vmem:[%s269 + $0x1d8] sm:$0xff]
        %v346 = vld [vmem:[%s269 + $0x1e0] sm:$0xff]
        %v347 = vld [vmem:[%s269 + $0x1e8] sm:$0xff]
        %v348 = vld [vmem:[%s269 + $0x1f0] sm:$0xff]
        %v349 = vld [vmem:[%s269 + $0x1f8] sm:$0xff]
        %v350 = vld [vmem:[%s269 + $0x200] sm:$0xff]
        %v351 = vld [vmem:[%s269 + $0x208] sm:$0xff]
        %v352 = vld [vmem:[%s269 + $0x210] sm:$0xff]
        %v353 = vld [vmem:[%s269 + $0x218] sm:$0xff]
        %v354 = vld [vmem:[%s269 + $0x220] sm:$0xff]
        %v355 = vld [vmem:[%s269 + $0x228] sm:$0xff]
        %v356 = vld [vmem:[%s269 + $0x230] sm:$0xff]
        %v357 = vld [vmem:[%s269 + $0x238] sm:$0xff]
        %v358 = vld [vmem:[%s269 + $0x240] sm:$0xff]
        %v359 = vld [vmem:[%s269 + $0x248] sm:$0xff]
        %v360 = vld [vmem:[%s269 + $0x250] sm:$0xff]
        %v361 = vld [vmem:[%s269 + $0x258] sm:$0xff]
        %v362 = vld [vmem:[%s269 + $0x260] sm:$0xff]
        %v363 = vld [vmem:[%s269 + $0x268] sm:$0xff]
        %v364 = vld [vmem:[%s269 + $0x270] sm:$0xff]
        %v365 = vld [vmem:[%s269 + $0x278] sm:$0xff]
        %v366 = vld [vmem:[%s269 + $0x280] sm:$0xff]
        %v367 = vld [vmem:[%s269 + $0x288] sm:$0xff]
        %v368 = vld [vmem:[%s269 + $0x290] sm:$0xff]
        %v369 = vld [vmem:[%s269 + $0x298] sm:$0xff]
        %v370 = vld [vmem:[%s269 + $0x2a0] sm:$0xff]
        %v371 = vld [vmem:[%s269 + $0x2a8] sm:$0xff]
        %v372 = vld [vmem:[%s269 + $0x2b0] sm:$0xff]
        %v373 = vld [vmem:[%s269 + $0x2b8] sm:$0xff]
        %v374 = vld [vmem:[%s269 + $0x2c0] sm:$0xff]
        %v375 = vld [vmem:[%s269 + $0x2c8] sm:$0xff]
        %v376 = vld [vmem:[%s269 + $0x2d0] sm:$0xff]
        %v377 = vld [vmem:[%s269 + $0x2d8] sm:$0xff]
        %v378 = vld [vmem:[%s269 + $0x2e0] sm:$0xff]
        %v379 = vld [vmem:[%s269 + $0x2e8] sm:$0xff]
        %v380 = vld [vmem:[%s269 + $0x2f0] sm:$0xff]
        %v381 = vld [vmem:[%s269 + $0x2f8] sm:$0xff]
        %v382 = vld [vmem:[%s269 + $0x300] sm:$0xff]
        %v383 = vld [vmem:[%s269 + $0x308] sm:$0xff]
        %v384 = vld [vmem:[%s269 + $0x310] sm:$0xff]
        %v385 = vld [vmem:[%s269 + $0x318] sm:$0xff]
        %v386 = vld [vmem:[%s269 + $0x320] sm:$0xff]
        %v387 = vld [vmem:[%s269 + $0x328] sm:$0xff]
        %v388 = vld [vmem:[%s269 + $0x330] sm:$0xff]
        %v389 = vld [vmem:[%s269 + $0x338] sm:$0xff]
        %v390 = vld [vmem:[%s269 + $0x340] sm:$0xff]
        %v391 = vld [vmem:[%s269 + $0x348] sm:$0xff]
        %v392 = vld [vmem:[%s269 + $0x350] sm:$0xff]
        %v393 = vld [vmem:[%s269 + $0x358] sm:$0xff]
        %v394 = vld [vmem:[%s269 + $0x360] sm:$0xff]
        %v395 = vld [vmem:[%s269 + $0x368] sm:$0xff]
        %v396 = vld [vmem:[%s269 + $0x370] sm:$0xff]
        %v397 = vld [vmem:[%s269 + $0x378] sm:$0xff]
        %v398 = vld [vmem:[%s269 + $0x380] sm:$0xff]
        %v399 = vld [vmem:[%s269 + $0x388] sm:$0xff]
        %v400 = vld [vmem:[%s269 + $0x390] sm:$0xff]
        %v401 = vld [vmem:[%s269 + $0x398] sm:$0xff]
        %v402 = vld [vmem:[%s269 + $0x3a0] sm:$0xff]
        %v403 = vld [vmem:[%s269 + $0x3a8] sm:$0xff]
        %v404 = vld [vmem:[%s269 + $0x3b0] sm:$0xff]
        %v405 = vld [vmem:[%s269 + $0x3b8] sm:$0xff]
        %v406 = vld [vmem:[%s269 + $0x3c0] sm:$0xff]
        %v407 = vld [vmem:[%s269 + $0x3c8] sm:$0xff]
        %v408 = vld [vmem:[%s269 + $0x3d0] sm:$0xff]
        %v409 = vld [vmem:[%s269 + $0x3d8] sm:$0xff]
        %v410 = vld [vmem:[%s269 + $0x3e0] sm:$0xff]
        %v411 = vld [vmem:[%s269 + $0x3e8] sm:$0xff]
        %v412 = vld [vmem:[%s269 + $0x3f0] sm:$0xff]
        %v413 = vld [vmem:[%s269 + $0x3f8] sm:$0xff]
        %414 = vxpose.xlu0.b32.start [1/16] %v286, 128
        %415 = vxpose.xlu0.b32.cont [2/16] %v287, 128
        %416 = vxpose.xlu0.b32.cont [3/16] %v288, 128
        %417 = vxpose.xlu0.b32.cont [4/16] %v289, 128
        %418 = vxpose.xlu0.b32.cont [5/16] %v290, 128
        %419 = vxpose.xlu0.b32.cont [6/16] %v291, 128
        %420 = vxpose.xlu0.b32.cont [7/16] %v292, 128
        %421 = vxpose.xlu0.b32.cont [8/16] %v293, 128
        %422 = vxpose.xlu0.b32.cont [9/16] %v294, 128
        %423 = vxpose.xlu0.b32.cont [10/16] %v295, 128
        %424 = vxpose.xlu0.b32.cont [11/16] %v296, 128
        %425 = vxpose.xlu0.b32.cont [12/16] %v297, 128
        %426 = vxpose.xlu0.b32.cont [13/16] %v298, 128
        %427 = vxpose.xlu0.b32.cont [14/16] %v299, 128
        %428 = vxpose.xlu0.b32.cont [15/16] %v300, 128
        %429 = vxpose.xlu0.b32.end [16/16] %v301, 128
        %v430 = vpop.trf.xlu0
        %v431 = vpop.trf.xlu0
        %v432 = vpop.trf.xlu0
        %v433 = vpop.trf.xlu0
        %v434 = vpop.trf.xlu0
        %v435 = vpop.trf.xlu0
        %v436 = vpop.trf.xlu0
        %v437 = vpop.trf.xlu0
        %v438 = vpop.trf.xlu0
        %v439 = vpop.trf.xlu0
        %v440 = vpop.trf.xlu0
        %v441 = vpop.trf.xlu0
        %v442 = vpop.trf.xlu0
        %v443 = vpop.trf.xlu0
        %v444 = vpop.trf.xlu0
        %v445 = vpop.trf.xlu0
        %446 = vxpose.xlu0.b32.start [1/16] %v302, 128
        %447 = vxpose.xlu0.b32.cont [2/16] %v303, 128
        %448 = vxpose.xlu0.b32.cont [3/16] %v304, 128
        %449 = vxpose.xlu0.b32.cont [4/16] %v305, 128
        %450 = vxpose.xlu0.b32.cont [5/16] %v306, 128
        %451 = vxpose.xlu0.b32.cont [6/16] %v307, 128
        %452 = vxpose.xlu0.b32.cont [7/16] %v308, 128
        %453 = vxpose.xlu0.b32.cont [8/16] %v309, 128
        %454 = vxpose.xlu0.b32.cont [9/16] %v310, 128
        %455 = vxpose.xlu0.b32.cont [10/16] %v311, 128
        %456 = vxpose.xlu0.b32.cont [11/16] %v312, 128
        %457 = vxpose.xlu0.b32.cont [12/16] %v313, 128
        %458 = vxpose.xlu0.b32.cont [13/16] %v314, 128
        %459 = vxpose.xlu0.b32.cont [14/16] %v315, 128
        %460 = vxpose.xlu0.b32.cont [15/16] %v316, 128
        %461 = vxpose.xlu0.b32.end [16/16] %v317, 128
        %v462 = vpop.trf.xlu0
        %v463 = vpop.trf.xlu0
        %v464 = vpop.trf.xlu0
        %v465 = vpop.trf.xlu0
        %v466 = vpop.trf.xlu0
        %v467 = vpop.trf.xlu0
        %v468 = vpop.trf.xlu0
        %v469 = vpop.trf.xlu0
        %v470 = vpop.trf.xlu0
        %v471 = vpop.trf.xlu0
        %v472 = vpop.trf.xlu0
        %v473 = vpop.trf.xlu0
        %v474 = vpop.trf.xlu0
        %v475 = vpop.trf.xlu0
        %v476 = vpop.trf.xlu0
        %v477 = vpop.trf.xlu0
        %478 = vxpose.xlu0.b32.start [1/16] %v318, 128
        %479 = vxpose.xlu0.b32.cont [2/16] %v319, 128
        %480 = vxpose.xlu0.b32.cont [3/16] %v320, 128
        %481 = vxpose.xlu0.b32.cont [4/16] %v321, 128
        %482 = vxpose.xlu0.b32.cont [5/16] %v322, 128
        %483 = vxpose.xlu0.b32.cont [6/16] %v323, 128
        %484 = vxpose.xlu0.b32.cont [7/16] %v324, 128
        %485 = vxpose.xlu0.b32.cont [8/16] %v325, 128
        %486 = vxpose.xlu0.b32.cont [9/16] %v326, 128
        %487 = vxpose.xlu0.b32.cont [10/16] %v327, 128
        %488 = vxpose.xlu0.b32.cont [11/16] %v328, 128
        %489 = vxpose.xlu0.b32.cont [12/16] %v329, 128
        %490 = vxpose.xlu0.b32.cont [13/16] %v330, 128
        %491 = vxpose.xlu0.b32.cont [14/16] %v331, 128
        %492 = vxpose.xlu0.b32.cont [15/16] %v332, 128
        %493 = vxpose.xlu0.b32.end [16/16] %v333, 128
        %v494 = vpop.trf.xlu0
        %v495 = vpop.trf.xlu0
        %v496 = vpop.trf.xlu0
        %v497 = vpop.trf.xlu0
        %v498 = vpop.trf.xlu0
        %v499 = vpop.trf.xlu0
        %v500 = vpop.trf.xlu0
        %v501 = vpop.trf.xlu0
        %v502 = vpop.trf.xlu0
        %v503 = vpop.trf.xlu0
        %v504 = vpop.trf.xlu0
        %v505 = vpop.trf.xlu0
        %v506 = vpop.trf.xlu0
        %v507 = vpop.trf.xlu0
        %v508 = vpop.trf.xlu0
        %v509 = vpop.trf.xlu0
        %510 = vxpose.xlu0.b32.start [1/16] %v334, 128
        %511 = vxpose.xlu0.b32.cont [2/16] %v335, 128
        %512 = vxpose.xlu0.b32.cont [3/16] %v336, 128
        %513 = vxpose.xlu0.b32.cont [4/16] %v337, 128
        %514 = vxpose.xlu0.b32.cont [5/16] %v338, 128
        %515 = vxpose.xlu0.b32.cont [6/16] %v339, 128
        %516 = vxpose.xlu0.b32.cont [7/16] %v340, 128
        %517 = vxpose.xlu0.b32.cont [8/16] %v341, 128
        %518 = vxpose.xlu0.b32.cont [9/16] %v342, 128
        %519 = vxpose.xlu0.b32.cont [10/16] %v343, 128
        %520 = vxpose.xlu0.b32.cont [11/16] %v344, 128
        %521 = vxpose.xlu0.b32.cont [12/16] %v345, 128
        %522 = vxpose.xlu0.b32.cont [13/16] %v346, 128
        %523 = vxpose.xlu0.b32.cont [14/16] %v347, 128
        %524 = vxpose.xlu0.b32.cont [15/16] %v348, 128
        %525 = vxpose.xlu0.b32.end [16/16] %v349, 128
        %v526 = vpop.trf.xlu0
        %v527 = vpop.trf.xlu0
        %v528 = vpop.trf.xlu0
        %v529 = vpop.trf.xlu0
        %v530 = vpop.trf.xlu0
        %v531 = vpop.trf.xlu0
        %v532 = vpop.trf.xlu0
        %v533 = vpop.trf.xlu0
        %v534 = vpop.trf.xlu0
        %v535 = vpop.trf.xlu0
        %v536 = vpop.trf.xlu0
        %v537 = vpop.trf.xlu0
        %v538 = vpop.trf.xlu0
        %v539 = vpop.trf.xlu0
        %v540 = vpop.trf.xlu0
        %v541 = vpop.trf.xlu0
        %542 = vxpose.xlu0.b32.start [1/16] %v350, 128
        %543 = vxpose.xlu0.b32.cont [2/16] %v351, 128
        %544 = vxpose.xlu0.b32.cont [3/16] %v352, 128
        %545 = vxpose.xlu0.b32.cont [4/16] %v353, 128
        %546 = vxpose.xlu0.b32.cont [5/16] %v354, 128
        %547 = vxpose.xlu0.b32.cont [6/16] %v355, 128
        %548 = vxpose.xlu0.b32.cont [7/16] %v356, 128
        %549 = vxpose.xlu0.b32.cont [8/16] %v357, 128
        %550 = vxpose.xlu0.b32.cont [9/16] %v358, 128
        %551 = vxpose.xlu0.b32.cont [10/16] %v359, 128
        %552 = vxpose.xlu0.b32.cont [11/16] %v360, 128
        %553 = vxpose.xlu0.b32.cont [12/16] %v361, 128
        %554 = vxpose.xlu0.b32.cont [13/16] %v362, 128
        %555 = vxpose.xlu0.b32.cont [14/16] %v363, 128
        %556 = vxpose.xlu0.b32.cont [15/16] %v364, 128
        %557 = vxpose.xlu0.b32.end [16/16] %v365, 128
        %v558 = vpop.trf.xlu0
        %v559 = vpop.trf.xlu0
        %v560 = vpop.trf.xlu0
        %v561 = vpop.trf.xlu0
        %v562 = vpop.trf.xlu0
        %v563 = vpop.trf.xlu0
        %v564 = vpop.trf.xlu0
        %v565 = vpop.trf.xlu0
        %v566 = vpop.trf.xlu0
        %v567 = vpop.trf.xlu0
        %v568 = vpop.trf.xlu0
        %v569 = vpop.trf.xlu0
        %v570 = vpop.trf.xlu0
        %v571 = vpop.trf.xlu0
        %v572 = vpop.trf.xlu0
        %v573 = vpop.trf.xlu0
        %574 = vxpose.xlu0.b32.start [1/16] %v366, 128
        %575 = vxpose.xlu0.b32.cont [2/16] %v367, 128
        %576 = vxpose.xlu0.b32.cont [3/16] %v368, 128
        %577 = vxpose.xlu0.b32.cont [4/16] %v369, 128
        %578 = vxpose.xlu0.b32.cont [5/16] %v370, 128
        %579 = vxpose.xlu0.b32.cont [6/16] %v371, 128
        %580 = vxpose.xlu0.b32.cont [7/16] %v372, 128
        %581 = vxpose.xlu0.b32.cont [8/16] %v373, 128
        %582 = vxpose.xlu0.b32.cont [9/16] %v374, 128
        %583 = vxpose.xlu0.b32.cont [10/16] %v375, 128
        %584 = vxpose.xlu0.b32.cont [11/16] %v376, 128
        %585 = vxpose.xlu0.b32.cont [12/16] %v377, 128
        %586 = vxpose.xlu0.b32.cont [13/16] %v378, 128
        %587 = vxpose.xlu0.b32.cont [14/16] %v379, 128
        %588 = vxpose.xlu0.b32.cont [15/16] %v380, 128
        %589 = vxpose.xlu0.b32.end [16/16] %v381, 128
        %v590 = vpop.trf.xlu0
        %v591 = vpop.trf.xlu0
        %v592 = vpop.trf.xlu0
        %v593 = vpop.trf.xlu0
        %v594 = vpop.trf.xlu0
        %v595 = vpop.trf.xlu0
        %v596 = vpop.trf.xlu0
        %v597 = vpop.trf.xlu0
        %v598 = vpop.trf.xlu0
        %v599 = vpop.trf.xlu0
        %v600 = vpop.trf.xlu0
        %v601 = vpop.trf.xlu0
        %v602 = vpop.trf.xlu0
        %v603 = vpop.trf.xlu0
        %v604 = vpop.trf.xlu0
        %v605 = vpop.trf.xlu0
        %606 = vxpose.xlu0.b32.start [1/16] %v382, 128
        %607 = vxpose.xlu0.b32.cont [2/16] %v383, 128
        %608 = vxpose.xlu0.b32.cont [3/16] %v384, 128
        %609 = vxpose.xlu0.b32.cont [4/16] %v385, 128
        %610 = vxpose.xlu0.b32.cont [5/16] %v386, 128
        %611 = vxpose.xlu0.b32.cont [6/16] %v387, 128
        %612 = vxpose.xlu0.b32.cont [7/16] %v388, 128
        %613 = vxpose.xlu0.b32.cont [8/16] %v389, 128
        %614 = vxpose.xlu0.b32.cont [9/16] %v390, 128
        %615 = vxpose.xlu0.b32.cont [10/16] %v391, 128
        %616 = vxpose.xlu0.b32.cont [11/16] %v392, 128
        %617 = vxpose.xlu0.b32.cont [12/16] %v393, 128
        %618 = vxpose.xlu0.b32.cont [13/16] %v394, 128
        %619 = vxpose.xlu0.b32.cont [14/16] %v395, 128
        %620 = vxpose.xlu0.b32.cont [15/16] %v396, 128
        %621 = vxpose.xlu0.b32.end [16/16] %v397, 128
        %v622 = vpop.trf.xlu0
        %v623 = vpop.trf.xlu0
        %v624 = vpop.trf.xlu0
        %v625 = vpop.trf.xlu0
        %v626 = vpop.trf.xlu0
        %v627 = vpop.trf.xlu0
        %v628 = vpop.trf.xlu0
        %v629 = vpop.trf.xlu0
        %v630 = vpop.trf.xlu0
        %v631 = vpop.trf.xlu0
        %v632 = vpop.trf.xlu0
        %v633 = vpop.trf.xlu0
        %v634 = vpop.trf.xlu0
        %v635 = vpop.trf.xlu0
        %v636 = vpop.trf.xlu0
        %v637 = vpop.trf.xlu0
        %638 = vxpose.xlu0.b32.start [1/16] %v398, 128
        %639 = vxpose.xlu0.b32.cont [2/16] %v399, 128
        %640 = vxpose.xlu0.b32.cont [3/16] %v400, 128
        %641 = vxpose.xlu0.b32.cont [4/16] %v401, 128
        %642 = vxpose.xlu0.b32.cont [5/16] %v402, 128
        %643 = vxpose.xlu0.b32.cont [6/16] %v403, 128
        %644 = vxpose.xlu0.b32.cont [7/16] %v404, 128
        %645 = vxpose.xlu0.b32.cont [8/16] %v405, 128
        %646 = vxpose.xlu0.b32.cont [9/16] %v406, 128
        %647 = vxpose.xlu0.b32.cont [10/16] %v407, 128
        %648 = vxpose.xlu0.b32.cont [11/16] %v408, 128
        %649 = vxpose.xlu0.b32.cont [12/16] %v409, 128
        %650 = vxpose.xlu0.b32.cont [13/16] %v410, 128
        %651 = vxpose.xlu0.b32.cont [14/16] %v411, 128
        %652 = vxpose.xlu0.b32.cont [15/16] %v412, 128
        %653 = vxpose.xlu0.b32.end [16/16] %v413, 128
        %v654 = vpop.trf.xlu0
        %v655 = vpop.trf.xlu0
        %v656 = vpop.trf.xlu0
        %v657 = vpop.trf.xlu0
        %v658 = vpop.trf.xlu0
        %v659 = vpop.trf.xlu0
        %v660 = vpop.trf.xlu0
        %v661 = vpop.trf.xlu0
        %v662 = vpop.trf.xlu0
        %v663 = vpop.trf.xlu0
        %v664 = vpop.trf.xlu0
        %v665 = vpop.trf.xlu0
        %v666 = vpop.trf.xlu0
        %v667 = vpop.trf.xlu0
        %v668 = vpop.trf.xlu0
        %v669 = vpop.trf.xlu0
        %s670 = sld [smem:[#allocation2]]
        %v671 = vstv %s670
        %v672 = vmul.f32 %v430, %v671
        %v673 = vmul.f32 %v462, %v671
        %v674 = vmul.f32 %v494, %v671
        %v675 = vmul.f32 %v526, %v671
        %v676 = vmul.f32 %v558, %v671
        %v677 = vmul.f32 %v590, %v671
        %v678 = vmul.f32 %v622, %v671
        %v679 = vmul.f32 %v654, %v671
        %v680 = vmul.f32 %v431, %v671
        %v681 = vmul.f32 %v463, %v671
        %v682 = vmul.f32 %v495, %v671
        %v683 = vmul.f32 %v527, %v671
        %v684 = vmul.f32 %v559, %v671
        %v685 = vmul.f32 %v591, %v671
        %v686 = vmul.f32 %v623, %v671
        %v687 = vmul.f32 %v655, %v671
        %s688 = sld [smem:[#allocation2 + $0x3]]
        %v689 = vstv %s688
        %v690 = vsub.f32 %v672, %v689
        %v691 = vsub.f32 %v673, %v689
        %v692 = vsub.f32 %v674, %v689
        %v693 = vsub.f32 %v675, %v689
        %v694 = vsub.f32 %v676, %v689
        %v695 = vsub.f32 %v677, %v689
        %v696 = vsub.f32 %v678, %v689
        %v697 = vsub.f32 %v679, %v689
        %v698 = vsub.f32 %v680, %v689
        %v699 = vsub.f32 %v681, %v689
        %v700 = vsub.f32 %v682, %v689
        %v701 = vsub.f32 %v683, %v689
        %v702 = vsub.f32 %v684, %v689
        %v703 = vsub.f32 %v685, %v689
        %v704 = vsub.f32 %v686, %v689
        %v705 = vsub.f32 %v687, %v689
        %v706 = vtanh.pop %v690
        %v707 = vtanh.pop %v691
        %v708 = vtanh.pop %v692
        %v709 = vtanh.pop %v693
        %v710 = vtanh.pop %v694
        %v711 = vtanh.pop %v695
        %v712 = vtanh.pop %v696
        %v713 = vtanh.pop %v697
        %v714 = vtanh.pop %v698
        %v715 = vtanh.pop %v699
        %v716 = vtanh.pop %v700
        %v717 = vtanh.pop %v701
        %v718 = vtanh.pop %v702
        %v719 = vtanh.pop %v703
        %v720 = vtanh.pop %v704
        %v721 = vtanh.pop %v705
        %s722 = sld [smem:[#allocation2 + $0x6]]
        %v723 = vld [vmem:[%s4] sm:$0xff]
        %v724 = vld [vmem:[%s4 + $0x8] sm:$0xff]
        %726 = vset.pattern.permute.xlu0 0
        %727 = vperm.xlu0 %726, %v723
        %v728 = vpop.permute.xlu0 %727
        %731 = vset.pattern.permute.xlu0 0
        %732 = vperm.xlu0 %731, %v724
        %v733 = vpop.permute.xlu0 %732
        %v735 = vmul.f32 %v728, %v706
        %v736 = vmul.f32 %v728, %v707
        %v737 = vmul.f32 %v728, %v708
        %v738 = vmul.f32 %v728, %v709
        %v739 = vmul.f32 %v728, %v710
        %v740 = vmul.f32 %v728, %v711
        %v741 = vmul.f32 %v728, %v712
        %v742 = vmul.f32 %v728, %v713
        %v743 = vmul.f32 %v733, %v714
        %v744 = vmul.f32 %v733, %v715
        %v745 = vmul.f32 %v733, %v716
        %v746 = vmul.f32 %v733, %v717
        %v747 = vmul.f32 %v733, %v718
        %v748 = vmul.f32 %v733, %v719
        %v749 = vmul.f32 %v733, %v720
        %v750 = vmul.f32 %v733, %v721
        %v751 = vadd.f32 %v735, %v743
        %v752 = vrot.slane %v751, 4
        %v753 = vadd.f32 %v751, %v752
        %v754 = vrot.slane %v753, 2
        %v755 = vadd.f32 %v753, %v754
        %v756 = vrot.slane %v755, 1
        %v757 = vadd.f32 %v755, %v756
        %v758 = vadd.f32 %v736, %v744
        %v759 = vrot.slane %v758, 4
        %v760 = vadd.f32 %v758, %v759
        %v761 = vrot.slane %v760, 2
        %v762 = vadd.f32 %v760, %v761
        %v763 = vrot.slane %v762, 1
        %v764 = vadd.f32 %v762, %v763
        %v765 = vadd.f32 %v737, %v745
        %v766 = vrot.slane %v765, 4
        %v767 = vadd.f32 %v765, %v766
        %v768 = vrot.slane %v767, 2
        %v769 = vadd.f32 %v767, %v768
        %v770 = vrot.slane %v769, 1
        %v771 = vadd.f32 %v769, %v770
        %v772 = vadd.f32 %v738, %v746
        %v773 = vrot.slane %v772, 4
        %v774 = vadd.f32 %v772, %v773
        %v775 = vrot.slane %v774, 2
        %v776 = vadd.f32 %v774, %v775
        %v777 = vrot.slane %v776, 1
        %v778 = vadd.f32 %v776, %v777
        %v779 = vadd.f32 %v739, %v747
        %v780 = vrot.slane %v779, 4
        %v781 = vadd.f32 %v779, %v780
        %v782 = vrot.slane %v781, 2
        %v783 = vadd.f32 %v781, %v782
        %v784 = vrot.slane %v783, 1
        %v785 = vadd.f32 %v783, %v784
        %v786 = vadd.f32 %v740, %v748
        %v787 = vrot.slane %v786, 4
        %v788 = vadd.f32 %v786, %v787
        %v789 = vrot.slane %v788, 2
        %v790 = vadd.f32 %v788, %v789
        %v791 = vrot.slane %v790, 1
        %v792 = vadd.f32 %v790, %v791
        %v793 = vadd.f32 %v741, %v749
        %v794 = vrot.slane %v793, 4
        %v795 = vadd.f32 %v793, %v794
        %v796 = vrot.slane %v795, 2
        %v797 = vadd.f32 %v795, %v796
        %v798 = vrot.slane %v797, 1
        %v799 = vadd.f32 %v797, %v798
        %v800 = vadd.f32 %v742, %v750
        %v801 = vrot.slane %v800, 4
        %v802 = vadd.f32 %v800, %v801
        %v803 = vrot.slane %v802, 2
        %v804 = vadd.f32 %v802, %v803
        %v805 = vrot.slane %v804, 1
        %v806 = vadd.f32 %v804, %v805
        %v807 = vstv %s722
        %v808 = vadd.f32 %v807, %v757
        %v809 = vadd.f32 %v807, %v764
        %v810 = vadd.f32 %v807, %v771
        %v811 = vadd.f32 %v807, %v778
        %v812 = vadd.f32 %v807, %v785
        %v813 = vadd.f32 %v807, %v792
        %v814 = vadd.f32 %v807, %v799
        %v815 = vadd.f32 %v807, %v806
        %v816 = vmin.f32 %v808, 1.0
        %v817 = vmin.f32 %v809, 1.0
        %v818 = vmin.f32 %v810, 1.0
        %v819 = vmin.f32 %v811, 1.0
        %v820 = vmin.f32 %v812, 1.0
        %v821 = vmin.f32 %v813, 1.0
        %v822 = vmin.f32 %v814, 1.0
        %v823 = vmin.f32 %v815, 1.0
        %v824 = vmax.f32 %v816, 0.0
        %v825 = vmax.f32 %v817, 0.0
        %v826 = vmax.f32 %v818, 0.0
        %v827 = vmax.f32 %v819, 0.0
        %v828 = vmax.f32 %v820, 0.0
        %v829 = vmax.f32 %v821, 0.0
        %v830 = vmax.f32 %v822, 0.0
        %v831 = vmax.f32 %v823, 0.0
        %s832 = sld [smem:[#allocation2 + $0x9]]
        %v833 = vstv %s832
        %v834 = vmul.f32 %v833, %v824
        %v835 = vmul.f32 %v833, %v825
        %v836 = vmul.f32 %v833, %v826
        %v837 = vmul.f32 %v833, %v827
        %v838 = vmul.f32 %v833, %v828
        %v839 = vmul.f32 %v833, %v829
        %v840 = vmul.f32 %v833, %v830
        %v841 = vmul.f32 %v833, %v831
        %v842 = vadd.f32 %v285, %v834
        %v843 = vadd.f32 %v285, %v835
        %v844 = vadd.f32 %v285, %v836
        %v845 = vadd.f32 %v285, %v837
        %v846 = vadd.f32 %v285, %v838
        %v847 = vadd.f32 %v285, %v839
        %v848 = vadd.f32 %v285, %v840
        %v849 = vadd.f32 %v285, %v841
        %v850 = vld [vmem:[%s275] sm:$0xff]
        %v851 = vld [vmem:[%s275 + $0x8] sm:$0xff]
        %v852 = vld [vmem:[%s275 + $0x10] sm:$0xff]
        %v853 = vld [vmem:[%s275 + $0x18] sm:$0xff]
        %v854 = vld [vmem:[%s275 + $0x20] sm:$0xff]
        %v855 = vld [vmem:[%s275 + $0x28] sm:$0xff]
        %v856 = vld [vmem:[%s275 + $0x30] sm:$0xff]
        %v857 = vld [vmem:[%s275 + $0x38] sm:$0xff]
        %v858 = vld [vmem:[%s275 + $0x40] sm:$0xff]
        %v859 = vld [vmem:[%s275 + $0x48] sm:$0xff]
        %v860 = vld [vmem:[%s275 + $0x50] sm:$0xff]
        %v861 = vld [vmem:[%s275 + $0x58] sm:$0xff]
        %v862 = vld [vmem:[%s275 + $0x60] sm:$0xff]
        %v863 = vld [vmem:[%s275 + $0x68] sm:$0xff]
        %v864 = vld [vmem:[%s275 + $0x70] sm:$0xff]
        %v865 = vld [vmem:[%s275 + $0x78] sm:$0xff]
        %v866 = vld [vmem:[%s275 + $0x80] sm:$0xff]
        %v867 = vld [vmem:[%s275 + $0x88] sm:$0xff]
        %v868 = vld [vmem:[%s275 + $0x90] sm:$0xff]
        %v869 = vld [vmem:[%s275 + $0x98] sm:$0xff]
        %v870 = vld [vmem:[%s275 + $0xa0] sm:$0xff]
        %v871 = vld [vmem:[%s275 + $0xa8] sm:$0xff]
        %v872 = vld [vmem:[%s275 + $0xb0] sm:$0xff]
        %v873 = vld [vmem:[%s275 + $0xb8] sm:$0xff]
        %v874 = vld [vmem:[%s275 + $0xc0] sm:$0xff]
        %v875 = vld [vmem:[%s275 + $0xc8] sm:$0xff]
        %v876 = vld [vmem:[%s275 + $0xd0] sm:$0xff]
        %v877 = vld [vmem:[%s275 + $0xd8] sm:$0xff]
        %v878 = vld [vmem:[%s275 + $0xe0] sm:$0xff]
        %v879 = vld [vmem:[%s275 + $0xe8] sm:$0xff]
        %v880 = vld [vmem:[%s275 + $0xf0] sm:$0xff]
        %v881 = vld [vmem:[%s275 + $0xf8] sm:$0xff]
        %v882 = vld [vmem:[%s275 + $0x100] sm:$0xff]
        %v883 = vld [vmem:[%s275 + $0x108] sm:$0xff]
        %v884 = vld [vmem:[%s275 + $0x110] sm:$0xff]
        %v885 = vld [vmem:[%s275 + $0x118] sm:$0xff]
        %v886 = vld [vmem:[%s275 + $0x120] sm:$0xff]
        %v887 = vld [vmem:[%s275 + $0x128] sm:$0xff]
        %v888 = vld [vmem:[%s275 + $0x130] sm:$0xff]
        %v889 = vld [vmem:[%s275 + $0x138] sm:$0xff]
        %v890 = vld [vmem:[%s275 + $0x140] sm:$0xff]
        %v891 = vld [vmem:[%s275 + $0x148] sm:$0xff]
        %v892 = vld [vmem:[%s275 + $0x150] sm:$0xff]
        %v893 = vld [vmem:[%s275 + $0x158] sm:$0xff]
        %v894 = vld [vmem:[%s275 + $0x160] sm:$0xff]
        %v895 = vld [vmem:[%s275 + $0x168] sm:$0xff]
        %v896 = vld [vmem:[%s275 + $0x170] sm:$0xff]
        %v897 = vld [vmem:[%s275 + $0x178] sm:$0xff]
        %v898 = vld [vmem:[%s275 + $0x180] sm:$0xff]
        %v899 = vld [vmem:[%s275 + $0x188] sm:$0xff]
        %v900 = vld [vmem:[%s275 + $0x190] sm:$0xff]
        %v901 = vld [vmem:[%s275 + $0x198] sm:$0xff]
        %v902 = vld [vmem:[%s275 + $0x1a0] sm:$0xff]
        %v903 = vld [vmem:[%s275 + $0x1a8] sm:$0xff]
        %v904 = vld [vmem:[%s275 + $0x1b0] sm:$0xff]
        %v905 = vld [vmem:[%s275 + $0x1b8] sm:$0xff]
        %v906 = vld [vmem:[%s275 + $0x1c0] sm:$0xff]
        %v907 = vld [vmem:[%s275 + $0x1c8] sm:$0xff]
        %v908 = vld [vmem:[%s275 + $0x1d0] sm:$0xff]
        %v909 = vld [vmem:[%s275 + $0x1d8] sm:$0xff]
        %v910 = vld [vmem:[%s275 + $0x1e0] sm:$0xff]
        %v911 = vld [vmem:[%s275 + $0x1e8] sm:$0xff]
        %v912 = vld [vmem:[%s275 + $0x1f0] sm:$0xff]
        %v913 = vld [vmem:[%s275 + $0x1f8] sm:$0xff]
        %v914 = vld [vmem:[%s275 + $0x200] sm:$0xff]
        %v915 = vld [vmem:[%s275 + $0x208] sm:$0xff]
        %v916 = vld [vmem:[%s275 + $0x210] sm:$0xff]
        %v917 = vld [vmem:[%s275 + $0x218] sm:$0xff]
        %v918 = vld [vmem:[%s275 + $0x220] sm:$0xff]
        %v919 = vld [vmem:[%s275 + $0x228] sm:$0xff]
        %v920 = vld [vmem:[%s275 + $0x230] sm:$0xff]
        %v921 = vld [vmem:[%s275 + $0x238] sm:$0xff]
        %v922 = vld [vmem:[%s275 + $0x240] sm:$0xff]
        %v923 = vld [vmem:[%s275 + $0x248] sm:$0xff]
        %v924 = vld [vmem:[%s275 + $0x250] sm:$0xff]
        %v925 = vld [vmem:[%s275 + $0x258] sm:$0xff]
        %v926 = vld [vmem:[%s275 + $0x260] sm:$0xff]
        %v927 = vld [vmem:[%s275 + $0x268] sm:$0xff]
        %v928 = vld [vmem:[%s275 + $0x270] sm:$0xff]
        %v929 = vld [vmem:[%s275 + $0x278] sm:$0xff]
        %v930 = vld [vmem:[%s275 + $0x280] sm:$0xff]
        %v931 = vld [vmem:[%s275 + $0x288] sm:$0xff]
        %v932 = vld [vmem:[%s275 + $0x290] sm:$0xff]
        %v933 = vld [vmem:[%s275 + $0x298] sm:$0xff]
        %v934 = vld [vmem:[%s275 + $0x2a0] sm:$0xff]
        %v935 = vld [vmem:[%s275 + $0x2a8] sm:$0xff]
        %v936 = vld [vmem:[%s275 + $0x2b0] sm:$0xff]
        %v937 = vld [vmem:[%s275 + $0x2b8] sm:$0xff]
        %v938 = vld [vmem:[%s275 + $0x2c0] sm:$0xff]
        %v939 = vld [vmem:[%s275 + $0x2c8] sm:$0xff]
        %v940 = vld [vmem:[%s275 + $0x2d0] sm:$0xff]
        %v941 = vld [vmem:[%s275 + $0x2d8] sm:$0xff]
        %v942 = vld [vmem:[%s275 + $0x2e0] sm:$0xff]
        %v943 = vld [vmem:[%s275 + $0x2e8] sm:$0xff]
        %v944 = vld [vmem:[%s275 + $0x2f0] sm:$0xff]
        %v945 = vld [vmem:[%s275 + $0x2f8] sm:$0xff]
        %v946 = vld [vmem:[%s275 + $0x300] sm:$0xff]
        %v947 = vld [vmem:[%s275 + $0x308] sm:$0xff]
        %v948 = vld [vmem:[%s275 + $0x310] sm:$0xff]
        %v949 = vld [vmem:[%s275 + $0x318] sm:$0xff]
        %v950 = vld [vmem:[%s275 + $0x320] sm:$0xff]
        %v951 = vld [vmem:[%s275 + $0x328] sm:$0xff]
        %v952 = vld [vmem:[%s275 + $0x330] sm:$0xff]
        %v953 = vld [vmem:[%s275 + $0x338] sm:$0xff]
        %v954 = vld [vmem:[%s275 + $0x340] sm:$0xff]
        %v955 = vld [vmem:[%s275 + $0x348] sm:$0xff]
        %v956 = vld [vmem:[%s275 + $0x350] sm:$0xff]
        %v957 = vld [vmem:[%s275 + $0x358] sm:$0xff]
        %v958 = vld [vmem:[%s275 + $0x360] sm:$0xff]
        %v959 = vld [vmem:[%s275 + $0x368] sm:$0xff]
        %v960 = vld [vmem:[%s275 + $0x370] sm:$0xff]
        %v961 = vld [vmem:[%s275 + $0x378] sm:$0xff]
        %v962 = vld [vmem:[%s275 + $0x380] sm:$0xff]
        %v963 = vld [vmem:[%s275 + $0x388] sm:$0xff]
        %v964 = vld [vmem:[%s275 + $0x390] sm:$0xff]
        %v965 = vld [vmem:[%s275 + $0x398] sm:$0xff]
        %v966 = vld [vmem:[%s275 + $0x3a0] sm:$0xff]
        %v967 = vld [vmem:[%s275 + $0x3a8] sm:$0xff]
        %v968 = vld [vmem:[%s275 + $0x3b0] sm:$0xff]
        %v969 = vld [vmem:[%s275 + $0x3b8] sm:$0xff]
        %v970 = vld [vmem:[%s275 + $0x3c0] sm:$0xff]
        %v971 = vld [vmem:[%s275 + $0x3c8] sm:$0xff]
        %v972 = vld [vmem:[%s275 + $0x3d0] sm:$0xff]
        %v973 = vld [vmem:[%s275 + $0x3d8] sm:$0xff]
        %v974 = vld [vmem:[%s275 + $0x3e0] sm:$0xff]
        %v975 = vld [vmem:[%s275 + $0x3e8] sm:$0xff]
        %v976 = vld [vmem:[%s275 + $0x3f0] sm:$0xff]
        %v977 = vld [vmem:[%s275 + $0x3f8] sm:$0xff]
        %978 = vxpose.xlu0.b32.start [1/16] %v850, 128
        %979 = vxpose.xlu0.b32.cont [2/16] %v851, 128
        %980 = vxpose.xlu0.b32.cont [3/16] %v852, 128
        %981 = vxpose.xlu0.b32.cont [4/16] %v853, 128
        %982 = vxpose.xlu0.b32.cont [5/16] %v854, 128
        %983 = vxpose.xlu0.b32.cont [6/16] %v855, 128
        %984 = vxpose.xlu0.b32.cont [7/16] %v856, 128
        %985 = vxpose.xlu0.b32.cont [8/16] %v857, 128
        %986 = vxpose.xlu0.b32.cont [9/16] %v858, 128
        %987 = vxpose.xlu0.b32.cont [10/16] %v859, 128
        %988 = vxpose.xlu0.b32.cont [11/16] %v860, 128
        %989 = vxpose.xlu0.b32.cont [12/16] %v861, 128
        %990 = vxpose.xlu0.b32.cont [13/16] %v862, 128
        %991 = vxpose.xlu0.b32.cont [14/16] %v863, 128
        %992 = vxpose.xlu0.b32.cont [15/16] %v864, 128
        %993 = vxpose.xlu0.b32.end [16/16] %v865, 128
        %v994 = vpop.trf.xlu0
        %v995 = vpop.trf.xlu0
        %v996 = vpop.trf.xlu0
        %v997 = vpop.trf.xlu0
        %v998 = vpop.trf.xlu0
        %v999 = vpop.trf.xlu0
        %v1000 = vpop.trf.xlu0
        %v1001 = vpop.trf.xlu0
        %v1002 = vpop.trf.xlu0
        %v1003 = vpop.trf.xlu0
        %v1004 = vpop.trf.xlu0
        %v1005 = vpop.trf.xlu0
        %v1006 = vpop.trf.xlu0
        %v1007 = vpop.trf.xlu0
        %v1008 = vpop.trf.xlu0
        %v1009 = vpop.trf.xlu0
        %1010 = vxpose.xlu0.b32.start [1/16] %v866, 128
        %1011 = vxpose.xlu0.b32.cont [2/16] %v867, 128
        %1012 = vxpose.xlu0.b32.cont [3/16] %v868, 128
        %1013 = vxpose.xlu0.b32.cont [4/16] %v869, 128
        %1014 = vxpose.xlu0.b32.cont [5/16] %v870, 128
        %1015 = vxpose.xlu0.b32.cont [6/16] %v871, 128
        %1016 = vxpose.xlu0.b32.cont [7/16] %v872, 128
        %1017 = vxpose.xlu0.b32.cont [8/16] %v873, 128
        %1018 = vxpose.xlu0.b32.cont [9/16] %v874, 128
        %1019 = vxpose.xlu0.b32.cont [10/16] %v875, 128
        %1020 = vxpose.xlu0.b32.cont [11/16] %v876, 128
        %1021 = vxpose.xlu0.b32.cont [12/16] %v877, 128
        %1022 = vxpose.xlu0.b32.cont [13/16] %v878, 128
        %1023 = vxpose.xlu0.b32.cont [14/16] %v879, 128
        %1024 = vxpose.xlu0.b32.cont [15/16] %v880, 128
        %1025 = vxpose.xlu0.b32.end [16/16] %v881, 128
        %v1026 = vpop.trf.xlu0
        %v1027 = vpop.trf.xlu0
        %v1028 = vpop.trf.xlu0
        %v1029 = vpop.trf.xlu0
        %v1030 = vpop.trf.xlu0
        %v1031 = vpop.trf.xlu0
        %v1032 = vpop.trf.xlu0
        %v1033 = vpop.trf.xlu0
        %v1034 = vpop.trf.xlu0
        %v1035 = vpop.trf.xlu0
        %v1036 = vpop.trf.xlu0
        %v1037 = vpop.trf.xlu0
        %v1038 = vpop.trf.xlu0
        %v1039 = vpop.trf.xlu0
        %v1040 = vpop.trf.xlu0
        %v1041 = vpop.trf.xlu0
        %1042 = vxpose.xlu0.b32.start [1/16] %v882, 128
        %1043 = vxpose.xlu0.b32.cont [2/16] %v883, 128
        %1044 = vxpose.xlu0.b32.cont [3/16] %v884, 128
        %1045 = vxpose.xlu0.b32.cont [4/16] %v885, 128
        %1046 = vxpose.xlu0.b32.cont [5/16] %v886, 128
        %1047 = vxpose.xlu0.b32.cont [6/16] %v887, 128
        %1048 = vxpose.xlu0.b32.cont [7/16] %v888, 128
        %1049 = vxpose.xlu0.b32.cont [8/16] %v889, 128
        %1050 = vxpose.xlu0.b32.cont [9/16] %v890, 128
        %1051 = vxpose.xlu0.b32.cont [10/16] %v891, 128
        %1052 = vxpose.xlu0.b32.cont [11/16] %v892, 128
        %1053 = vxpose.xlu0.b32.cont [12/16] %v893, 128
        %1054 = vxpose.xlu0.b32.cont [13/16] %v894, 128
        %1055 = vxpose.xlu0.b32.cont [14/16] %v895, 128
        %1056 = vxpose.xlu0.b32.cont [15/16] %v896, 128
        %1057 = vxpose.xlu0.b32.end [16/16] %v897, 128
        %v1058 = vpop.trf.xlu0
        %v1059 = vpop.trf.xlu0
        %v1060 = vpop.trf.xlu0
        %v1061 = vpop.trf.xlu0
        %v1062 = vpop.trf.xlu0
        %v1063 = vpop.trf.xlu0
        %v1064 = vpop.trf.xlu0
        %v1065 = vpop.trf.xlu0
        %v1066 = vpop.trf.xlu0
        %v1067 = vpop.trf.xlu0
        %v1068 = vpop.trf.xlu0
        %v1069 = vpop.trf.xlu0
        %v1070 = vpop.trf.xlu0
        %v1071 = vpop.trf.xlu0
        %v1072 = vpop.trf.xlu0
        %v1073 = vpop.trf.xlu0
        %1074 = vxpose.xlu0.b32.start [1/16] %v898, 128
        %1075 = vxpose.xlu0.b32.cont [2/16] %v899, 128
        %1076 = vxpose.xlu0.b32.cont [3/16] %v900, 128
        %1077 = vxpose.xlu0.b32.cont [4/16] %v901, 128
        %1078 = vxpose.xlu0.b32.cont [5/16] %v902, 128
        %1079 = vxpose.xlu0.b32.cont [6/16] %v903, 128
        %1080 = vxpose.xlu0.b32.cont [7/16] %v904, 128
        %1081 = vxpose.xlu0.b32.cont [8/16] %v905, 128
        %1082 = vxpose.xlu0.b32.cont [9/16] %v906, 128
        %1083 = vxpose.xlu0.b32.cont [10/16] %v907, 128
        %1084 = vxpose.xlu0.b32.cont [11/16] %v908, 128
        %1085 = vxpose.xlu0.b32.cont [12/16] %v909, 128
        %1086 = vxpose.xlu0.b32.cont [13/16] %v910, 128
        %1087 = vxpose.xlu0.b32.cont [14/16] %v911, 128
        %1088 = vxpose.xlu0.b32.cont [15/16] %v912, 128
        %1089 = vxpose.xlu0.b32.end [16/16] %v913, 128
        %v1090 = vpop.trf.xlu0
        %v1091 = vpop.trf.xlu0
        %v1092 = vpop.trf.xlu0
        %v1093 = vpop.trf.xlu0
        %v1094 = vpop.trf.xlu0
        %v1095 = vpop.trf.xlu0
        %v1096 = vpop.trf.xlu0
        %v1097 = vpop.trf.xlu0
        %v1098 = vpop.trf.xlu0
        %v1099 = vpop.trf.xlu0
        %v1100 = vpop.trf.xlu0
        %v1101 = vpop.trf.xlu0
        %v1102 = vpop.trf.xlu0
        %v1103 = vpop.trf.xlu0
        %v1104 = vpop.trf.xlu0
        %v1105 = vpop.trf.xlu0
        %1106 = vxpose.xlu0.b32.start [1/16] %v914, 128
        %1107 = vxpose.xlu0.b32.cont [2/16] %v915, 128
        %1108 = vxpose.xlu0.b32.cont [3/16] %v916, 128
        %1109 = vxpose.xlu0.b32.cont [4/16] %v917, 128
        %1110 = vxpose.xlu0.b32.cont [5/16] %v918, 128
        %1111 = vxpose.xlu0.b32.cont [6/16] %v919, 128
        %1112 = vxpose.xlu0.b32.cont [7/16] %v920, 128
        %1113 = vxpose.xlu0.b32.cont [8/16] %v921, 128
        %1114 = vxpose.xlu0.b32.cont [9/16] %v922, 128
        %1115 = vxpose.xlu0.b32.cont [10/16] %v923, 128
        %1116 = vxpose.xlu0.b32.cont [11/16] %v924, 128
        %1117 = vxpose.xlu0.b32.cont [12/16] %v925, 128
        %1118 = vxpose.xlu0.b32.cont [13/16] %v926, 128
        %1119 = vxpose.xlu0.b32.cont [14/16] %v927, 128
        %1120 = vxpose.xlu0.b32.cont [15/16] %v928, 128
        %1121 = vxpose.xlu0.b32.end [16/16] %v929, 128
        %v1122 = vpop.trf.xlu0
        %v1123 = vpop.trf.xlu0
        %v1124 = vpop.trf.xlu0
        %v1125 = vpop.trf.xlu0
        %v1126 = vpop.trf.xlu0
        %v1127 = vpop.trf.xlu0
        %v1128 = vpop.trf.xlu0
        %v1129 = vpop.trf.xlu0
        %v1130 = vpop.trf.xlu0
        %v1131 = vpop.trf.xlu0
        %v1132 = vpop.trf.xlu0
        %v1133 = vpop.trf.xlu0
        %v1134 = vpop.trf.xlu0
        %v1135 = vpop.trf.xlu0
        %v1136 = vpop.trf.xlu0
        %v1137 = vpop.trf.xlu0
        %1138 = vxpose.xlu0.b32.start [1/16] %v930, 128
        %1139 = vxpose.xlu0.b32.cont [2/16] %v931, 128
        %1140 = vxpose.xlu0.b32.cont [3/16] %v932, 128
        %1141 = vxpose.xlu0.b32.cont [4/16] %v933, 128
        %1142 = vxpose.xlu0.b32.cont [5/16] %v934, 128
        %1143 = vxpose.xlu0.b32.cont [6/16] %v935, 128
        %1144 = vxpose.xlu0.b32.cont [7/16] %v936, 128
        %1145 = vxpose.xlu0.b32.cont [8/16] %v937, 128
        %1146 = vxpose.xlu0.b32.cont [9/16] %v938, 128
        %1147 = vxpose.xlu0.b32.cont [10/16] %v939, 128
        %1148 = vxpose.xlu0.b32.cont [11/16] %v940, 128
        %1149 = vxpose.xlu0.b32.cont [12/16] %v941, 128
        %1150 = vxpose.xlu0.b32.cont [13/16] %v942, 128
        %1151 = vxpose.xlu0.b32.cont [14/16] %v943, 128
        %1152 = vxpose.xlu0.b32.cont [15/16] %v944, 128
        %1153 = vxpose.xlu0.b32.end [16/16] %v945, 128
        %v1154 = vpop.trf.xlu0
        %v1155 = vpop.trf.xlu0
        %v1156 = vpop.trf.xlu0
        %v1157 = vpop.trf.xlu0
        %v1158 = vpop.trf.xlu0
        %v1159 = vpop.trf.xlu0
        %v1160 = vpop.trf.xlu0
        %v1161 = vpop.trf.xlu0
        %v1162 = vpop.trf.xlu0
        %v1163 = vpop.trf.xlu0
        %v1164 = vpop.trf.xlu0
        %v1165 = vpop.trf.xlu0
        %v1166 = vpop.trf.xlu0
        %v1167 = vpop.trf.xlu0
        %v1168 = vpop.trf.xlu0
        %v1169 = vpop.trf.xlu0
        %1170 = vxpose.xlu0.b32.start [1/16] %v946, 128
        %1171 = vxpose.xlu0.b32.cont [2/16] %v947, 128
        %1172 = vxpose.xlu0.b32.cont [3/16] %v948, 128
        %1173 = vxpose.xlu0.b32.cont [4/16] %v949, 128
        %1174 = vxpose.xlu0.b32.cont [5/16] %v950, 128
        %1175 = vxpose.xlu0.b32.cont [6/16] %v951, 128
        %1176 = vxpose.xlu0.b32.cont [7/16] %v952, 128
        %1177 = vxpose.xlu0.b32.cont [8/16] %v953, 128
        %1178 = vxpose.xlu0.b32.cont [9/16] %v954, 128
        %1179 = vxpose.xlu0.b32.cont [10/16] %v955, 128
        %1180 = vxpose.xlu0.b32.cont [11/16] %v956, 128
        %1181 = vxpose.xlu0.b32.cont [12/16] %v957, 128
        %1182 = vxpose.xlu0.b32.cont [13/16] %v958, 128
        %1183 = vxpose.xlu0.b32.cont [14/16] %v959, 128
        %1184 = vxpose.xlu0.b32.cont [15/16] %v960, 128
        %1185 = vxpose.xlu0.b32.end [16/16] %v961, 128
        %v1186 = vpop.trf.xlu0
        %v1187 = vpop.trf.xlu0
        %v1188 = vpop.trf.xlu0
        %v1189 = vpop.trf.xlu0
        %v1190 = vpop.trf.xlu0
        %v1191 = vpop.trf.xlu0
        %v1192 = vpop.trf.xlu0
        %v1193 = vpop.trf.xlu0
        %v1194 = vpop.trf.xlu0
        %v1195 = vpop.trf.xlu0
        %v1196 = vpop.trf.xlu0
        %v1197 = vpop.trf.xlu0
        %v1198 = vpop.trf.xlu0
        %v1199 = vpop.trf.xlu0
        %v1200 = vpop.trf.xlu0
        %v1201 = vpop.trf.xlu0
        %1202 = vxpose.xlu0.b32.start [1/16] %v962, 128
        %1203 = vxpose.xlu0.b32.cont [2/16] %v963, 128
        %1204 = vxpose.xlu0.b32.cont [3/16] %v964, 128
        %1205 = vxpose.xlu0.b32.cont [4/16] %v965, 128
        %1206 = vxpose.xlu0.b32.cont [5/16] %v966, 128
        %1207 = vxpose.xlu0.b32.cont [6/16] %v967, 128
        %1208 = vxpose.xlu0.b32.cont [7/16] %v968, 128
        %1209 = vxpose.xlu0.b32.cont [8/16] %v969, 128
        %1210 = vxpose.xlu0.b32.cont [9/16] %v970, 128
        %1211 = vxpose.xlu0.b32.cont [10/16] %v971, 128
        %1212 = vxpose.xlu0.b32.cont [11/16] %v972, 128
        %1213 = vxpose.xlu0.b32.cont [12/16] %v973, 128
        %1214 = vxpose.xlu0.b32.cont [13/16] %v974, 128
        %1215 = vxpose.xlu0.b32.cont [14/16] %v975, 128
        %1216 = vxpose.xlu0.b32.cont [15/16] %v976, 128
        %1217 = vxpose.xlu0.b32.end [16/16] %v977, 128
        %v1218 = vpop.trf.xlu0
        %v1219 = vpop.trf.xlu0
        %v1220 = vpop.trf.xlu0
        %v1221 = vpop.trf.xlu0
        %v1222 = vpop.trf.xlu0
        %v1223 = vpop.trf.xlu0
        %v1224 = vpop.trf.xlu0
        %v1225 = vpop.trf.xlu0
        %v1226 = vpop.trf.xlu0
        %v1227 = vpop.trf.xlu0
        %v1228 = vpop.trf.xlu0
        %v1229 = vpop.trf.xlu0
        %v1230 = vpop.trf.xlu0
        %v1231 = vpop.trf.xlu0
        %v1232 = vpop.trf.xlu0
        %v1233 = vpop.trf.xlu0
        %s1234 = sld [smem:[#allocation2 + $0x1]]
        %v1235 = vstv %s1234
        %v1236 = vmul.f32 %v994, %v1235
        %v1237 = vmul.f32 %v1026, %v1235
        %v1238 = vmul.f32 %v1058, %v1235
        %v1239 = vmul.f32 %v1090, %v1235
        %v1240 = vmul.f32 %v1122, %v1235
        %v1241 = vmul.f32 %v1154, %v1235
        %v1242 = vmul.f32 %v1186, %v1235
        %v1243 = vmul.f32 %v1218, %v1235
        %v1244 = vmul.f32 %v995, %v1235
        %v1245 = vmul.f32 %v1027, %v1235
        %v1246 = vmul.f32 %v1059, %v1235
        %v1247 = vmul.f32 %v1091, %v1235
        %v1248 = vmul.f32 %v1123, %v1235
        %v1249 = vmul.f32 %v1155, %v1235
        %v1250 = vmul.f32 %v1187, %v1235
        %v1251 = vmul.f32 %v1219, %v1235
        %s1252 = sld [smem:[#allocation2 + $0x4]]
        %v1253 = vstv %s1252
        %v1254 = vsub.f32 %v1236, %v1253
        %v1255 = vsub.f32 %v1237, %v1253
        %v1256 = vsub.f32 %v1238, %v1253
        %v1257 = vsub.f32 %v1239, %v1253
        %v1258 = vsub.f32 %v1240, %v1253
        %v1259 = vsub.f32 %v1241, %v1253
        %v1260 = vsub.f32 %v1242, %v1253
        %v1261 = vsub.f32 %v1243, %v1253
        %v1262 = vsub.f32 %v1244, %v1253
        %v1263 = vsub.f32 %v1245, %v1253
        %v1264 = vsub.f32 %v1246, %v1253
        %v1265 = vsub.f32 %v1247, %v1253
        %v1266 = vsub.f32 %v1248, %v1253
        %v1267 = vsub.f32 %v1249, %v1253
        %v1268 = vsub.f32 %v1250, %v1253
        %v1269 = vsub.f32 %v1251, %v1253
        %v1270 = vtanh.pop %v1254
        %v1271 = vtanh.pop %v1255
        %v1272 = vtanh.pop %v1256
        %v1273 = vtanh.pop %v1257
        %v1274 = vtanh.pop %v1258
        %v1275 = vtanh.pop %v1259
        %v1276 = vtanh.pop %v1260
        %v1277 = vtanh.pop %v1261
        %v1278 = vtanh.pop %v1262
        %v1279 = vtanh.pop %v1263
        %v1280 = vtanh.pop %v1264
        %v1281 = vtanh.pop %v1265
        %v1282 = vtanh.pop %v1266
        %v1283 = vtanh.pop %v1267
        %v1284 = vtanh.pop %v1268
        %v1285 = vtanh.pop %v1269
        %s1286 = sld [smem:[#allocation2 + $0x7]]
        %s1287 = scalar_lea.vmem %s4, 16
        %v1288 = vld [vmem:[%s1287] sm:$0xff]
        %v1289 = vld [vmem:[%s1287 + $0x8] sm:$0xff]
        %1291 = vset.pattern.permute.xlu0 0
        %1292 = vperm.xlu0 %1291, %v1288
        %v1293 = vpop.permute.xlu0 %1292
        %1296 = vset.pattern.permute.xlu0 0
        %1297 = vperm.xlu0 %1296, %v1289
        %v1298 = vpop.permute.xlu0 %1297
        %v1300 = vmul.f32 %v1293, %v1270
        %v1301 = vmul.f32 %v1293, %v1271
        %v1302 = vmul.f32 %v1293, %v1272
        %v1303 = vmul.f32 %v1293, %v1273
        %v1304 = vmul.f32 %v1293, %v1274
        %v1305 = vmul.f32 %v1293, %v1275
        %v1306 = vmul.f32 %v1293, %v1276
        %v1307 = vmul.f32 %v1293, %v1277
        %v1308 = vmul.f32 %v1298, %v1278
        %v1309 = vmul.f32 %v1298, %v1279
        %v1310 = vmul.f32 %v1298, %v1280
        %v1311 = vmul.f32 %v1298, %v1281
        %v1312 = vmul.f32 %v1298, %v1282
        %v1313 = vmul.f32 %v1298, %v1283
        %v1314 = vmul.f32 %v1298, %v1284
        %v1315 = vmul.f32 %v1298, %v1285
        %v1316 = vadd.f32 %v1300, %v1308
        %v1317 = vrot.slane %v1316, 4
        %v1318 = vadd.f32 %v1316, %v1317
        %v1319 = vrot.slane %v1318, 2
        %v1320 = vadd.f32 %v1318, %v1319
        %v1321 = vrot.slane %v1320, 1
        %v1322 = vadd.f32 %v1320, %v1321
        %v1323 = vadd.f32 %v1301, %v1309
        %v1324 = vrot.slane %v1323, 4
        %v1325 = vadd.f32 %v1323, %v1324
        %v1326 = vrot.slane %v1325, 2
        %v1327 = vadd.f32 %v1325, %v1326
        %v1328 = vrot.slane %v1327, 1
        %v1329 = vadd.f32 %v1327, %v1328
        %v1330 = vadd.f32 %v1302, %v1310
        %v1331 = vrot.slane %v1330, 4
        %v1332 = vadd.f32 %v1330, %v1331
        %v1333 = vrot.slane %v1332, 2
        %v1334 = vadd.f32 %v1332, %v1333
        %v1335 = vrot.slane %v1334, 1
        %v1336 = vadd.f32 %v1334, %v1335
        %v1337 = vadd.f32 %v1303, %v1311
        %v1338 = vrot.slane %v1337, 4
        %v1339 = vadd.f32 %v1337, %v1338
        %v1340 = vrot.slane %v1339, 2
        %v1341 = vadd.f32 %v1339, %v1340
        %v1342 = vrot.slane %v1341, 1
        %v1343 = vadd.f32 %v1341, %v1342
        %v1344 = vadd.f32 %v1304, %v1312
        %v1345 = vrot.slane %v1344, 4
        %v1346 = vadd.f32 %v1344, %v1345
        %v1347 = vrot.slane %v1346, 2
        %v1348 = vadd.f32 %v1346, %v1347
        %v1349 = vrot.slane %v1348, 1
        %v1350 = vadd.f32 %v1348, %v1349
        %v1351 = vadd.f32 %v1305, %v1313
        %v1352 = vrot.slane %v1351, 4
        %v1353 = vadd.f32 %v1351, %v1352
        %v1354 = vrot.slane %v1353, 2
        %v1355 = vadd.f32 %v1353, %v1354
        %v1356 = vrot.slane %v1355, 1
        %v1357 = vadd.f32 %v1355, %v1356
        %v1358 = vadd.f32 %v1306, %v1314
        %v1359 = vrot.slane %v1358, 4
        %v1360 = vadd.f32 %v1358, %v1359
        %v1361 = vrot.slane %v1360, 2
        %v1362 = vadd.f32 %v1360, %v1361
        %v1363 = vrot.slane %v1362, 1
        %v1364 = vadd.f32 %v1362, %v1363
        %v1365 = vadd.f32 %v1307, %v1315
        %v1366 = vrot.slane %v1365, 4
        %v1367 = vadd.f32 %v1365, %v1366
        %v1368 = vrot.slane %v1367, 2
        %v1369 = vadd.f32 %v1367, %v1368
        %v1370 = vrot.slane %v1369, 1
        %v1371 = vadd.f32 %v1369, %v1370
        %v1372 = vstv %s1286
        %v1373 = vadd.f32 %v1372, %v1322
        %v1374 = vadd.f32 %v1372, %v1329
        %v1375 = vadd.f32 %v1372, %v1336
        %v1376 = vadd.f32 %v1372, %v1343
        %v1377 = vadd.f32 %v1372, %v1350
        %v1378 = vadd.f32 %v1372, %v1357
        %v1379 = vadd.f32 %v1372, %v1364
        %v1380 = vadd.f32 %v1372, %v1371
        %v1381 = vmin.f32 %v1373, 1.0
        %v1382 = vmin.f32 %v1374, 1.0
        %v1383 = vmin.f32 %v1375, 1.0
        %v1384 = vmin.f32 %v1376, 1.0
        %v1385 = vmin.f32 %v1377, 1.0
        %v1386 = vmin.f32 %v1378, 1.0
        %v1387 = vmin.f32 %v1379, 1.0
        %v1388 = vmin.f32 %v1380, 1.0
        %v1389 = vmax.f32 %v1381, 0.0
        %v1390 = vmax.f32 %v1382, 0.0
        %v1391 = vmax.f32 %v1383, 0.0
        %v1392 = vmax.f32 %v1384, 0.0
        %v1393 = vmax.f32 %v1385, 0.0
        %v1394 = vmax.f32 %v1386, 0.0
        %v1395 = vmax.f32 %v1387, 0.0
        %v1396 = vmax.f32 %v1388, 0.0
        %s1397 = sld [smem:[#allocation2 + $0xa]]
        %v1398 = vstv %s1397
        %v1399 = vmul.f32 %v1398, %v1389
        %v1400 = vmul.f32 %v1398, %v1390
        %v1401 = vmul.f32 %v1398, %v1391
        %v1402 = vmul.f32 %v1398, %v1392
        %v1403 = vmul.f32 %v1398, %v1393
        %v1404 = vmul.f32 %v1398, %v1394
        %v1405 = vmul.f32 %v1398, %v1395
        %v1406 = vmul.f32 %v1398, %v1396
        %v1407 = vadd.f32 %v842, %v1399
        %v1408 = vadd.f32 %v843, %v1400
        %v1409 = vadd.f32 %v844, %v1401
        %v1410 = vadd.f32 %v845, %v1402
        %v1411 = vadd.f32 %v846, %v1403
        %v1412 = vadd.f32 %v847, %v1404
        %v1413 = vadd.f32 %v848, %v1405
        %v1414 = vadd.f32 %v849, %v1406
        %v1415 = vld [vmem:[%s281] sm:$0xff]
        %v1416 = vld [vmem:[%s281 + $0x8] sm:$0xff]
        %v1417 = vld [vmem:[%s281 + $0x10] sm:$0xff]
        %v1418 = vld [vmem:[%s281 + $0x18] sm:$0xff]
        %v1419 = vld [vmem:[%s281 + $0x20] sm:$0xff]
        %v1420 = vld [vmem:[%s281 + $0x28] sm:$0xff]
        %v1421 = vld [vmem:[%s281 + $0x30] sm:$0xff]
        %v1422 = vld [vmem:[%s281 + $0x38] sm:$0xff]
        %v1423 = vld [vmem:[%s281 + $0x40] sm:$0xff]
        %v1424 = vld [vmem:[%s281 + $0x48] sm:$0xff]
        %v1425 = vld [vmem:[%s281 + $0x50] sm:$0xff]
        %v1426 = vld [vmem:[%s281 + $0x58] sm:$0xff]
        %v1427 = vld [vmem:[%s281 + $0x60] sm:$0xff]
        %v1428 = vld [vmem:[%s281 + $0x68] sm:$0xff]
        %v1429 = vld [vmem:[%s281 + $0x70] sm:$0xff]
        %v1430 = vld [vmem:[%s281 + $0x78] sm:$0xff]
        %v1431 = vld [vmem:[%s281 + $0x80] sm:$0xff]
        %v1432 = vld [vmem:[%s281 + $0x88] sm:$0xff]
        %v1433 = vld [vmem:[%s281 + $0x90] sm:$0xff]
        %v1434 = vld [vmem:[%s281 + $0x98] sm:$0xff]
        %v1435 = vld [vmem:[%s281 + $0xa0] sm:$0xff]
        %v1436 = vld [vmem:[%s281 + $0xa8] sm:$0xff]
        %v1437 = vld [vmem:[%s281 + $0xb0] sm:$0xff]
        %v1438 = vld [vmem:[%s281 + $0xb8] sm:$0xff]
        %v1439 = vld [vmem:[%s281 + $0xc0] sm:$0xff]
        %v1440 = vld [vmem:[%s281 + $0xc8] sm:$0xff]
        %v1441 = vld [vmem:[%s281 + $0xd0] sm:$0xff]
        %v1442 = vld [vmem:[%s281 + $0xd8] sm:$0xff]
        %v1443 = vld [vmem:[%s281 + $0xe0] sm:$0xff]
        %v1444 = vld [vmem:[%s281 + $0xe8] sm:$0xff]
        %v1445 = vld [vmem:[%s281 + $0xf0] sm:$0xff]
        %v1446 = vld [vmem:[%s281 + $0xf8] sm:$0xff]
        %v1447 = vld [vmem:[%s281 + $0x100] sm:$0xff]
        %v1448 = vld [vmem:[%s281 + $0x108] sm:$0xff]
        %v1449 = vld [vmem:[%s281 + $0x110] sm:$0xff]
        %v1450 = vld [vmem:[%s281 + $0x118] sm:$0xff]
        %v1451 = vld [vmem:[%s281 + $0x120] sm:$0xff]
        %v1452 = vld [vmem:[%s281 + $0x128] sm:$0xff]
        %v1453 = vld [vmem:[%s281 + $0x130] sm:$0xff]
        %v1454 = vld [vmem:[%s281 + $0x138] sm:$0xff]
        %v1455 = vld [vmem:[%s281 + $0x140] sm:$0xff]
        %v1456 = vld [vmem:[%s281 + $0x148] sm:$0xff]
        %v1457 = vld [vmem:[%s281 + $0x150] sm:$0xff]
        %v1458 = vld [vmem:[%s281 + $0x158] sm:$0xff]
        %v1459 = vld [vmem:[%s281 + $0x160] sm:$0xff]
        %v1460 = vld [vmem:[%s281 + $0x168] sm:$0xff]
        %v1461 = vld [vmem:[%s281 + $0x170] sm:$0xff]
        %v1462 = vld [vmem:[%s281 + $0x178] sm:$0xff]
        %v1463 = vld [vmem:[%s281 + $0x180] sm:$0xff]
        %v1464 = vld [vmem:[%s281 + $0x188] sm:$0xff]
        %v1465 = vld [vmem:[%s281 + $0x190] sm:$0xff]
        %v1466 = vld [vmem:[%s281 + $0x198] sm:$0xff]
        %v1467 = vld [vmem:[%s281 + $0x1a0] sm:$0xff]
        %v1468 = vld [vmem:[%s281 + $0x1a8] sm:$0xff]
        %v1469 = vld [vmem:[%s281 + $0x1b0] sm:$0xff]
        %v1470 = vld [vmem:[%s281 + $0x1b8] sm:$0xff]
        %v1471 = vld [vmem:[%s281 + $0x1c0] sm:$0xff]
        %v1472 = vld [vmem:[%s281 + $0x1c8] sm:$0xff]
        %v1473 = vld [vmem:[%s281 + $0x1d0] sm:$0xff]
        %v1474 = vld [vmem:[%s281 + $0x1d8] sm:$0xff]
        %v1475 = vld [vmem:[%s281 + $0x1e0] sm:$0xff]
        %v1476 = vld [vmem:[%s281 + $0x1e8] sm:$0xff]
        %v1477 = vld [vmem:[%s281 + $0x1f0] sm:$0xff]
        %v1478 = vld [vmem:[%s281 + $0x1f8] sm:$0xff]
        %v1479 = vld [vmem:[%s281 + $0x200] sm:$0xff]
        %v1480 = vld [vmem:[%s281 + $0x208] sm:$0xff]
        %v1481 = vld [vmem:[%s281 + $0x210] sm:$0xff]
        %v1482 = vld [vmem:[%s281 + $0x218] sm:$0xff]
        %v1483 = vld [vmem:[%s281 + $0x220] sm:$0xff]
        %v1484 = vld [vmem:[%s281 + $0x228] sm:$0xff]
        %v1485 = vld [vmem:[%s281 + $0x230] sm:$0xff]
        %v1486 = vld [vmem:[%s281 + $0x238] sm:$0xff]
        %v1487 = vld [vmem:[%s281 + $0x240] sm:$0xff]
        %v1488 = vld [vmem:[%s281 + $0x248] sm:$0xff]
        %v1489 = vld [vmem:[%s281 + $0x250] sm:$0xff]
        %v1490 = vld [vmem:[%s281 + $0x258] sm:$0xff]
        %v1491 = vld [vmem:[%s281 + $0x260] sm:$0xff]
        %v1492 = vld [vmem:[%s281 + $0x268] sm:$0xff]
        %v1493 = vld [vmem:[%s281 + $0x270] sm:$0xff]
        %v1494 = vld [vmem:[%s281 + $0x278] sm:$0xff]
        %v1495 = vld [vmem:[%s281 + $0x280] sm:$0xff]
        %v1496 = vld [vmem:[%s281 + $0x288] sm:$0xff]
        %v1497 = vld [vmem:[%s281 + $0x290] sm:$0xff]
        %v1498 = vld [vmem:[%s281 + $0x298] sm:$0xff]
        %v1499 = vld [vmem:[%s281 + $0x2a0] sm:$0xff]
        %v1500 = vld [vmem:[%s281 + $0x2a8] sm:$0xff]
        %v1501 = vld [vmem:[%s281 + $0x2b0] sm:$0xff]
        %v1502 = vld [vmem:[%s281 + $0x2b8] sm:$0xff]
        %v1503 = vld [vmem:[%s281 + $0x2c0] sm:$0xff]
        %v1504 = vld [vmem:[%s281 + $0x2c8] sm:$0xff]
        %v1505 = vld [vmem:[%s281 + $0x2d0] sm:$0xff]
        %v1506 = vld [vmem:[%s281 + $0x2d8] sm:$0xff]
        %v1507 = vld [vmem:[%s281 + $0x2e0] sm:$0xff]
        %v1508 = vld [vmem:[%s281 + $0x2e8] sm:$0xff]
        %v1509 = vld [vmem:[%s281 + $0x2f0] sm:$0xff]
        %v1510 = vld [vmem:[%s281 + $0x2f8] sm:$0xff]
        %v1511 = vld [vmem:[%s281 + $0x300] sm:$0xff]
        %v1512 = vld [vmem:[%s281 + $0x308] sm:$0xff]
        %v1513 = vld [vmem:[%s281 + $0x310] sm:$0xff]
        %v1514 = vld [vmem:[%s281 + $0x318] sm:$0xff]
        %v1515 = vld [vmem:[%s281 + $0x320] sm:$0xff]
        %v1516 = vld [vmem:[%s281 + $0x328] sm:$0xff]
        %v1517 = vld [vmem:[%s281 + $0x330] sm:$0xff]
        %v1518 = vld [vmem:[%s281 + $0x338] sm:$0xff]
        %v1519 = vld [vmem:[%s281 + $0x340] sm:$0xff]
        %v1520 = vld [vmem:[%s281 + $0x348] sm:$0xff]
        %v1521 = vld [vmem:[%s281 + $0x350] sm:$0xff]
        %v1522 = vld [vmem:[%s281 + $0x358] sm:$0xff]
        %v1523 = vld [vmem:[%s281 + $0x360] sm:$0xff]
        %v1524 = vld [vmem:[%s281 + $0x368] sm:$0xff]
        %v1525 = vld [vmem:[%s281 + $0x370] sm:$0xff]
        %v1526 = vld [vmem:[%s281 + $0x378] sm:$0xff]
        %v1527 = vld [vmem:[%s281 + $0x380] sm:$0xff]
        %v1528 = vld [vmem:[%s281 + $0x388] sm:$0xff]
        %v1529 = vld [vmem:[%s281 + $0x390] sm:$0xff]
        %v1530 = vld [vmem:[%s281 + $0x398] sm:$0xff]
        %v1531 = vld [vmem:[%s281 + $0x3a0] sm:$0xff]
        %v1532 = vld [vmem:[%s281 + $0x3a8] sm:$0xff]
        %v1533 = vld [vmem:[%s281 + $0x3b0] sm:$0xff]
        %v1534 = vld [vmem:[%s281 + $0x3b8] sm:$0xff]
        %v1535 = vld [vmem:[%s281 + $0x3c0] sm:$0xff]
        %v1536 = vld [vmem:[%s281 + $0x3c8] sm:$0xff]
        %v1537 = vld [vmem:[%s281 + $0x3d0] sm:$0xff]
        %v1538 = vld [vmem:[%s281 + $0x3d8] sm:$0xff]
        %v1539 = vld [vmem:[%s281 + $0x3e0] sm:$0xff]
        %v1540 = vld [vmem:[%s281 + $0x3e8] sm:$0xff]
        %v1541 = vld [vmem:[%s281 + $0x3f0] sm:$0xff]
        %v1542 = vld [vmem:[%s281 + $0x3f8] sm:$0xff]
        %1543 = vxpose.xlu0.b32.start [1/16] %v1415, 128
        %1544 = vxpose.xlu0.b32.cont [2/16] %v1416, 128
        %1545 = vxpose.xlu0.b32.cont [3/16] %v1417, 128
        %1546 = vxpose.xlu0.b32.cont [4/16] %v1418, 128
        %1547 = vxpose.xlu0.b32.cont [5/16] %v1419, 128
        %1548 = vxpose.xlu0.b32.cont [6/16] %v1420, 128
        %1549 = vxpose.xlu0.b32.cont [7/16] %v1421, 128
        %1550 = vxpose.xlu0.b32.cont [8/16] %v1422, 128
        %1551 = vxpose.xlu0.b32.cont [9/16] %v1423, 128
        %1552 = vxpose.xlu0.b32.cont [10/16] %v1424, 128
        %1553 = vxpose.xlu0.b32.cont [11/16] %v1425, 128
        %1554 = vxpose.xlu0.b32.cont [12/16] %v1426, 128
        %1555 = vxpose.xlu0.b32.cont [13/16] %v1427, 128
        %1556 = vxpose.xlu0.b32.cont [14/16] %v1428, 128
        %1557 = vxpose.xlu0.b32.cont [15/16] %v1429, 128
        %1558 = vxpose.xlu0.b32.end [16/16] %v1430, 128
        %v1559 = vpop.trf.xlu0
        %v1560 = vpop.trf.xlu0
        %v1561 = vpop.trf.xlu0
        %v1562 = vpop.trf.xlu0
        %v1563 = vpop.trf.xlu0
        %v1564 = vpop.trf.xlu0
        %v1565 = vpop.trf.xlu0
        %v1566 = vpop.trf.xlu0
        %v1567 = vpop.trf.xlu0
        %v1568 = vpop.trf.xlu0
        %v1569 = vpop.trf.xlu0
        %v1570 = vpop.trf.xlu0
        %v1571 = vpop.trf.xlu0
        %v1572 = vpop.trf.xlu0
        %v1573 = vpop.trf.xlu0
        %v1574 = vpop.trf.xlu0
        %1575 = vxpose.xlu0.b32.start [1/16] %v1431, 128
        %1576 = vxpose.xlu0.b32.cont [2/16] %v1432, 128
        %1577 = vxpose.xlu0.b32.cont [3/16] %v1433, 128
        %1578 = vxpose.xlu0.b32.cont [4/16] %v1434, 128
        %1579 = vxpose.xlu0.b32.cont [5/16] %v1435, 128
        %1580 = vxpose.xlu0.b32.cont [6/16] %v1436, 128
        %1581 = vxpose.xlu0.b32.cont [7/16] %v1437, 128
        %1582 = vxpose.xlu0.b32.cont [8/16] %v1438, 128
        %1583 = vxpose.xlu0.b32.cont [9/16] %v1439, 128
        %1584 = vxpose.xlu0.b32.cont [10/16] %v1440, 128
        %1585 = vxpose.xlu0.b32.cont [11/16] %v1441, 128
        %1586 = vxpose.xlu0.b32.cont [12/16] %v1442, 128
        %1587 = vxpose.xlu0.b32.cont [13/16] %v1443, 128
        %1588 = vxpose.xlu0.b32.cont [14/16] %v1444, 128
        %1589 = vxpose.xlu0.b32.cont [15/16] %v1445, 128
        %1590 = vxpose.xlu0.b32.end [16/16] %v1446, 128
        %v1591 = vpop.trf.xlu0
        %v1592 = vpop.trf.xlu0
        %v1593 = vpop.trf.xlu0
        %v1594 = vpop.trf.xlu0
        %v1595 = vpop.trf.xlu0
        %v1596 = vpop.trf.xlu0
        %v1597 = vpop.trf.xlu0
        %v1598 = vpop.trf.xlu0
        %v1599 = vpop.trf.xlu0
        %v1600 = vpop.trf.xlu0
        %v1601 = vpop.trf.xlu0
        %v1602 = vpop.trf.xlu0
        %v1603 = vpop.trf.xlu0
        %v1604 = vpop.trf.xlu0
        %v1605 = vpop.trf.xlu0
        %v1606 = vpop.trf.xlu0
        %1607 = vxpose.xlu0.b32.start [1/16] %v1447, 128
        %1608 = vxpose.xlu0.b32.cont [2/16] %v1448, 128
        %1609 = vxpose.xlu0.b32.cont [3/16] %v1449, 128
        %1610 = vxpose.xlu0.b32.cont [4/16] %v1450, 128
        %1611 = vxpose.xlu0.b32.cont [5/16] %v1451, 128
        %1612 = vxpose.xlu0.b32.cont [6/16] %v1452, 128
        %1613 = vxpose.xlu0.b32.cont [7/16] %v1453, 128
        %1614 = vxpose.xlu0.b32.cont [8/16] %v1454, 128
        %1615 = vxpose.xlu0.b32.cont [9/16] %v1455, 128
        %1616 = vxpose.xlu0.b32.cont [10/16] %v1456, 128
        %1617 = vxpose.xlu0.b32.cont [11/16] %v1457, 128
        %1618 = vxpose.xlu0.b32.cont [12/16] %v1458, 128
        %1619 = vxpose.xlu0.b32.cont [13/16] %v1459, 128
        %1620 = vxpose.xlu0.b32.cont [14/16] %v1460, 128
        %1621 = vxpose.xlu0.b32.cont [15/16] %v1461, 128
        %1622 = vxpose.xlu0.b32.end [16/16] %v1462, 128
        %v1623 = vpop.trf.xlu0
        %v1624 = vpop.trf.xlu0
        %v1625 = vpop.trf.xlu0
        %v1626 = vpop.trf.xlu0
        %v1627 = vpop.trf.xlu0
        %v1628 = vpop.trf.xlu0
        %v1629 = vpop.trf.xlu0
        %v1630 = vpop.trf.xlu0
        %v1631 = vpop.trf.xlu0
        %v1632 = vpop.trf.xlu0
        %v1633 = vpop.trf.xlu0
        %v1634 = vpop.trf.xlu0
        %v1635 = vpop.trf.xlu0
        %v1636 = vpop.trf.xlu0
        %v1637 = vpop.trf.xlu0
        %v1638 = vpop.trf.xlu0
        %1639 = vxpose.xlu0.b32.start [1/16] %v1463, 128
        %1640 = vxpose.xlu0.b32.cont [2/16] %v1464, 128
        %1641 = vxpose.xlu0.b32.cont [3/16] %v1465, 128
        %1642 = vxpose.xlu0.b32.cont [4/16] %v1466, 128
        %1643 = vxpose.xlu0.b32.cont [5/16] %v1467, 128
        %1644 = vxpose.xlu0.b32.cont [6/16] %v1468, 128
        %1645 = vxpose.xlu0.b32.cont [7/16] %v1469, 128
        %1646 = vxpose.xlu0.b32.cont [8/16] %v1470, 128
        %1647 = vxpose.xlu0.b32.cont [9/16] %v1471, 128
        %1648 = vxpose.xlu0.b32.cont [10/16] %v1472, 128
        %1649 = vxpose.xlu0.b32.cont [11/16] %v1473, 128
        %1650 = vxpose.xlu0.b32.cont [12/16] %v1474, 128
        %1651 = vxpose.xlu0.b32.cont [13/16] %v1475, 128
        %1652 = vxpose.xlu0.b32.cont [14/16] %v1476, 128
        %1653 = vxpose.xlu0.b32.cont [15/16] %v1477, 128
        %1654 = vxpose.xlu0.b32.end [16/16] %v1478, 128
        %v1655 = vpop.trf.xlu0
        %v1656 = vpop.trf.xlu0
        %v1657 = vpop.trf.xlu0
        %v1658 = vpop.trf.xlu0
        %v1659 = vpop.trf.xlu0
        %v1660 = vpop.trf.xlu0
        %v1661 = vpop.trf.xlu0
        %v1662 = vpop.trf.xlu0
        %v1663 = vpop.trf.xlu0
        %v1664 = vpop.trf.xlu0
        %v1665 = vpop.trf.xlu0
        %v1666 = vpop.trf.xlu0
        %v1667 = vpop.trf.xlu0
        %v1668 = vpop.trf.xlu0
        %v1669 = vpop.trf.xlu0
        %v1670 = vpop.trf.xlu0
        %1671 = vxpose.xlu0.b32.start [1/16] %v1479, 128
        %1672 = vxpose.xlu0.b32.cont [2/16] %v1480, 128
        %1673 = vxpose.xlu0.b32.cont [3/16] %v1481, 128
        %1674 = vxpose.xlu0.b32.cont [4/16] %v1482, 128
        %1675 = vxpose.xlu0.b32.cont [5/16] %v1483, 128
        %1676 = vxpose.xlu0.b32.cont [6/16] %v1484, 128
        %1677 = vxpose.xlu0.b32.cont [7/16] %v1485, 128
        %1678 = vxpose.xlu0.b32.cont [8/16] %v1486, 128
        %1679 = vxpose.xlu0.b32.cont [9/16] %v1487, 128
        %1680 = vxpose.xlu0.b32.cont [10/16] %v1488, 128
        %1681 = vxpose.xlu0.b32.cont [11/16] %v1489, 128
        %1682 = vxpose.xlu0.b32.cont [12/16] %v1490, 128
        %1683 = vxpose.xlu0.b32.cont [13/16] %v1491, 128
        %1684 = vxpose.xlu0.b32.cont [14/16] %v1492, 128
        %1685 = vxpose.xlu0.b32.cont [15/16] %v1493, 128
        %1686 = vxpose.xlu0.b32.end [16/16] %v1494, 128
        %v1687 = vpop.trf.xlu0
        %v1688 = vpop.trf.xlu0
        %v1689 = vpop.trf.xlu0
        %v1690 = vpop.trf.xlu0
        %v1691 = vpop.trf.xlu0
        %v1692 = vpop.trf.xlu0
        %v1693 = vpop.trf.xlu0
        %v1694 = vpop.trf.xlu0
        %v1695 = vpop.trf.xlu0
        %v1696 = vpop.trf.xlu0
        %v1697 = vpop.trf.xlu0
        %v1698 = vpop.trf.xlu0
        %v1699 = vpop.trf.xlu0
        %v1700 = vpop.trf.xlu0
        %v1701 = vpop.trf.xlu0
        %v1702 = vpop.trf.xlu0
        %1703 = vxpose.xlu0.b32.start [1/16] %v1495, 128
        %1704 = vxpose.xlu0.b32.cont [2/16] %v1496, 128
        %1705 = vxpose.xlu0.b32.cont [3/16] %v1497, 128
        %1706 = vxpose.xlu0.b32.cont [4/16] %v1498, 128
        %1707 = vxpose.xlu0.b32.cont [5/16] %v1499, 128
        %1708 = vxpose.xlu0.b32.cont [6/16] %v1500, 128
        %1709 = vxpose.xlu0.b32.cont [7/16] %v1501, 128
        %1710 = vxpose.xlu0.b32.cont [8/16] %v1502, 128
        %1711 = vxpose.xlu0.b32.cont [9/16] %v1503, 128
        %1712 = vxpose.xlu0.b32.cont [10/16] %v1504, 128
        %1713 = vxpose.xlu0.b32.cont [11/16] %v1505, 128
        %1714 = vxpose.xlu0.b32.cont [12/16] %v1506, 128
        %1715 = vxpose.xlu0.b32.cont [13/16] %v1507, 128
        %1716 = vxpose.xlu0.b32.cont [14/16] %v1508, 128
        %1717 = vxpose.xlu0.b32.cont [15/16] %v1509, 128
        %1718 = vxpose.xlu0.b32.end [16/16] %v1510, 128
        %v1719 = vpop.trf.xlu0
        %v1720 = vpop.trf.xlu0
        %v1721 = vpop.trf.xlu0
        %v1722 = vpop.trf.xlu0
        %v1723 = vpop.trf.xlu0
        %v1724 = vpop.trf.xlu0
        %v1725 = vpop.trf.xlu0
        %v1726 = vpop.trf.xlu0
        %v1727 = vpop.trf.xlu0
        %v1728 = vpop.trf.xlu0
        %v1729 = vpop.trf.xlu0
        %v1730 = vpop.trf.xlu0
        %v1731 = vpop.trf.xlu0
        %v1732 = vpop.trf.xlu0
        %v1733 = vpop.trf.xlu0
        %v1734 = vpop.trf.xlu0
        %1735 = vxpose.xlu0.b32.start [1/16] %v1511, 128
        %1736 = vxpose.xlu0.b32.cont [2/16] %v1512, 128
        %1737 = vxpose.xlu0.b32.cont [3/16] %v1513, 128
        %1738 = vxpose.xlu0.b32.cont [4/16] %v1514, 128
        %1739 = vxpose.xlu0.b32.cont [5/16] %v1515, 128
        %1740 = vxpose.xlu0.b32.cont [6/16] %v1516, 128
        %1741 = vxpose.xlu0.b32.cont [7/16] %v1517, 128
        %1742 = vxpose.xlu0.b32.cont [8/16] %v1518, 128
        %1743 = vxpose.xlu0.b32.cont [9/16] %v1519, 128
        %1744 = vxpose.xlu0.b32.cont [10/16] %v1520, 128
        %1745 = vxpose.xlu0.b32.cont [11/16] %v1521, 128
        %1746 = vxpose.xlu0.b32.cont [12/16] %v1522, 128
        %1747 = vxpose.xlu0.b32.cont [13/16] %v1523, 128
        %1748 = vxpose.xlu0.b32.cont [14/16] %v1524, 128
        %1749 = vxpose.xlu0.b32.cont [15/16] %v1525, 128
        %1750 = vxpose.xlu0.b32.end [16/16] %v1526, 128
        %v1751 = vpop.trf.xlu0
        %v1752 = vpop.trf.xlu0
        %v1753 = vpop.trf.xlu0
        %v1754 = vpop.trf.xlu0
        %v1755 = vpop.trf.xlu0
        %v1756 = vpop.trf.xlu0
        %v1757 = vpop.trf.xlu0
        %v1758 = vpop.trf.xlu0
        %v1759 = vpop.trf.xlu0
        %v1760 = vpop.trf.xlu0
        %v1761 = vpop.trf.xlu0
        %v1762 = vpop.trf.xlu0
        %v1763 = vpop.trf.xlu0
        %v1764 = vpop.trf.xlu0
        %v1765 = vpop.trf.xlu0
        %v1766 = vpop.trf.xlu0
        %1767 = vxpose.xlu0.b32.start [1/16] %v1527, 128
        %1768 = vxpose.xlu0.b32.cont [2/16] %v1528, 128
        %1769 = vxpose.xlu0.b32.cont [3/16] %v1529, 128
        %1770 = vxpose.xlu0.b32.cont [4/16] %v1530, 128
        %1771 = vxpose.xlu0.b32.cont [5/16] %v1531, 128
        %1772 = vxpose.xlu0.b32.cont [6/16] %v1532, 128
        %1773 = vxpose.xlu0.b32.cont [7/16] %v1533, 128
        %1774 = vxpose.xlu0.b32.cont [8/16] %v1534, 128
        %1775 = vxpose.xlu0.b32.cont [9/16] %v1535, 128
        %1776 = vxpose.xlu0.b32.cont [10/16] %v1536, 128
        %1777 = vxpose.xlu0.b32.cont [11/16] %v1537, 128
        %1778 = vxpose.xlu0.b32.cont [12/16] %v1538, 128
        %1779 = vxpose.xlu0.b32.cont [13/16] %v1539, 128
        %1780 = vxpose.xlu0.b32.cont [14/16] %v1540, 128
        %1781 = vxpose.xlu0.b32.cont [15/16] %v1541, 128
        %1782 = vxpose.xlu0.b32.end [16/16] %v1542, 128
        %v1783 = vpop.trf.xlu0
        %v1784 = vpop.trf.xlu0
        %v1785 = vpop.trf.xlu0
        %v1786 = vpop.trf.xlu0
        %v1787 = vpop.trf.xlu0
        %v1788 = vpop.trf.xlu0
        %v1789 = vpop.trf.xlu0
        %v1790 = vpop.trf.xlu0
        %v1791 = vpop.trf.xlu0
        %v1792 = vpop.trf.xlu0
        %v1793 = vpop.trf.xlu0
        %v1794 = vpop.trf.xlu0
        %v1795 = vpop.trf.xlu0
        %v1796 = vpop.trf.xlu0
        %v1797 = vpop.trf.xlu0
        %v1798 = vpop.trf.xlu0
        %s1799 = sld [smem:[#allocation2 + $0x2]]
        %v1800 = vstv %s1799
        %v1801 = vmul.f32 %v1559, %v1800
        %v1802 = vmul.f32 %v1591, %v1800
        %v1803 = vmul.f32 %v1623, %v1800
        %v1804 = vmul.f32 %v1655, %v1800
        %v1805 = vmul.f32 %v1687, %v1800
        %v1806 = vmul.f32 %v1719, %v1800
        %v1807 = vmul.f32 %v1751, %v1800
        %v1808 = vmul.f32 %v1783, %v1800
        %v1809 = vmul.f32 %v1560, %v1800
        %v1810 = vmul.f32 %v1592, %v1800
        %v1811 = vmul.f32 %v1624, %v1800
        %v1812 = vmul.f32 %v1656, %v1800
        %v1813 = vmul.f32 %v1688, %v1800
        %v1814 = vmul.f32 %v1720, %v1800
        %v1815 = vmul.f32 %v1752, %v1800
        %v1816 = vmul.f32 %v1784, %v1800
        %s1817 = sld [smem:[#allocation2 + $0x5]]
        %v1818 = vstv %s1817
        %v1819 = vsub.f32 %v1801, %v1818
        %v1820 = vsub.f32 %v1802, %v1818
        %v1821 = vsub.f32 %v1803, %v1818
        %v1822 = vsub.f32 %v1804, %v1818
        %v1823 = vsub.f32 %v1805, %v1818
        %v1824 = vsub.f32 %v1806, %v1818
        %v1825 = vsub.f32 %v1807, %v1818
        %v1826 = vsub.f32 %v1808, %v1818
        %v1827 = vsub.f32 %v1809, %v1818
        %v1828 = vsub.f32 %v1810, %v1818
        %v1829 = vsub.f32 %v1811, %v1818
        %v1830 = vsub.f32 %v1812, %v1818
        %v1831 = vsub.f32 %v1813, %v1818
        %v1832 = vsub.f32 %v1814, %v1818
        %v1833 = vsub.f32 %v1815, %v1818
        %v1834 = vsub.f32 %v1816, %v1818
        %v1835 = vtanh.pop %v1819
        %v1836 = vtanh.pop %v1820
        %v1837 = vtanh.pop %v1821
        %v1838 = vtanh.pop %v1822
        %v1839 = vtanh.pop %v1823
        %v1840 = vtanh.pop %v1824
        %v1841 = vtanh.pop %v1825
        %v1842 = vtanh.pop %v1826
        %v1843 = vtanh.pop %v1827
        %v1844 = vtanh.pop %v1828
        %v1845 = vtanh.pop %v1829
        %v1846 = vtanh.pop %v1830
        %v1847 = vtanh.pop %v1831
        %v1848 = vtanh.pop %v1832
        %v1849 = vtanh.pop %v1833
        %v1850 = vtanh.pop %v1834
        %s1851 = sld [smem:[#allocation2 + $0x8]]
        %s1852 = scalar_lea.vmem %s4, 32
        %v1853 = vld [vmem:[%s1852] sm:$0xff]
        %v1854 = vld [vmem:[%s1852 + $0x8] sm:$0xff]
        %1856 = vset.pattern.permute.xlu0 0
        %1857 = vperm.xlu0 %1856, %v1853
        %v1858 = vpop.permute.xlu0 %1857
        %1861 = vset.pattern.permute.xlu0 0
        %1862 = vperm.xlu0 %1861, %v1854
        %v1863 = vpop.permute.xlu0 %1862
        %v1865 = vmul.f32 %v1858, %v1835
        %v1866 = vmul.f32 %v1858, %v1836
        %v1867 = vmul.f32 %v1858, %v1837
        %v1868 = vmul.f32 %v1858, %v1838
        %v1869 = vmul.f32 %v1858, %v1839
        %v1870 = vmul.f32 %v1858, %v1840
        %v1871 = vmul.f32 %v1858, %v1841
        %v1872 = vmul.f32 %v1858, %v1842
        %v1873 = vmul.f32 %v1863, %v1843
        %v1874 = vmul.f32 %v1863, %v1844
        %v1875 = vmul.f32 %v1863, %v1845
        %v1876 = vmul.f32 %v1863, %v1846
        %v1877 = vmul.f32 %v1863, %v1847
        %v1878 = vmul.f32 %v1863, %v1848
        %v1879 = vmul.f32 %v1863, %v1849
        %v1880 = vmul.f32 %v1863, %v1850
        %v1881 = vadd.f32 %v1865, %v1873
        %v1882 = vrot.slane %v1881, 4
        %v1883 = vadd.f32 %v1881, %v1882
        %v1884 = vrot.slane %v1883, 2
        %v1885 = vadd.f32 %v1883, %v1884
        %v1886 = vrot.slane %v1885, 1
        %v1887 = vadd.f32 %v1885, %v1886
        %v1888 = vadd.f32 %v1866, %v1874
        %v1889 = vrot.slane %v1888, 4
        %v1890 = vadd.f32 %v1888, %v1889
        %v1891 = vrot.slane %v1890, 2
        %v1892 = vadd.f32 %v1890, %v1891
        %v1893 = vrot.slane %v1892, 1
        %v1894 = vadd.f32 %v1892, %v1893
        %v1895 = vadd.f32 %v1867, %v1875
        %v1896 = vrot.slane %v1895, 4
        %v1897 = vadd.f32 %v1895, %v1896
        %v1898 = vrot.slane %v1897, 2
        %v1899 = vadd.f32 %v1897, %v1898
        %v1900 = vrot.slane %v1899, 1
        %v1901 = vadd.f32 %v1899, %v1900
        %v1902 = vadd.f32 %v1868, %v1876
        %v1903 = vrot.slane %v1902, 4
        %v1904 = vadd.f32 %v1902, %v1903
        %v1905 = vrot.slane %v1904, 2
        %v1906 = vadd.f32 %v1904, %v1905
        %v1907 = vrot.slane %v1906, 1
        %v1908 = vadd.f32 %v1906, %v1907
        %v1909 = vadd.f32 %v1869, %v1877
        %v1910 = vrot.slane %v1909, 4
        %v1911 = vadd.f32 %v1909, %v1910
        %v1912 = vrot.slane %v1911, 2
        %v1913 = vadd.f32 %v1911, %v1912
        %v1914 = vrot.slane %v1913, 1
        %v1915 = vadd.f32 %v1913, %v1914
        %v1916 = vadd.f32 %v1870, %v1878
        %v1917 = vrot.slane %v1916, 4
        %v1918 = vadd.f32 %v1916, %v1917
        %v1919 = vrot.slane %v1918, 2
        %v1920 = vadd.f32 %v1918, %v1919
        %v1921 = vrot.slane %v1920, 1
        %v1922 = vadd.f32 %v1920, %v1921
        %v1923 = vadd.f32 %v1871, %v1879
        %v1924 = vrot.slane %v1923, 4
        %v1925 = vadd.f32 %v1923, %v1924
        %v1926 = vrot.slane %v1925, 2
        %v1927 = vadd.f32 %v1925, %v1926
        %v1928 = vrot.slane %v1927, 1
        %v1929 = vadd.f32 %v1927, %v1928
        %v1930 = vadd.f32 %v1872, %v1880
        %v1931 = vrot.slane %v1930, 4
        %v1932 = vadd.f32 %v1930, %v1931
        %v1933 = vrot.slane %v1932, 2
        %v1934 = vadd.f32 %v1932, %v1933
        %v1935 = vrot.slane %v1934, 1
        %v1936 = vadd.f32 %v1934, %v1935
        %v1937 = vstv %s1851
        %v1938 = vadd.f32 %v1937, %v1887
        %v1939 = vadd.f32 %v1937, %v1894
        %v1940 = vadd.f32 %v1937, %v1901
        %v1941 = vadd.f32 %v1937, %v1908
        %v1942 = vadd.f32 %v1937, %v1915
        %v1943 = vadd.f32 %v1937, %v1922
        %v1944 = vadd.f32 %v1937, %v1929
        %v1945 = vadd.f32 %v1937, %v1936
        %v1946 = vmin.f32 %v1938, 1.0
        %v1947 = vmin.f32 %v1939, 1.0
        %v1948 = vmin.f32 %v1940, 1.0
        %v1949 = vmin.f32 %v1941, 1.0
        %v1950 = vmin.f32 %v1942, 1.0
        %v1951 = vmin.f32 %v1943, 1.0
        %v1952 = vmin.f32 %v1944, 1.0
        %v1953 = vmin.f32 %v1945, 1.0
        %v1954 = vmax.f32 %v1946, 0.0
        %v1955 = vmax.f32 %v1947, 0.0
        %v1956 = vmax.f32 %v1948, 0.0
        %v1957 = vmax.f32 %v1949, 0.0
        %v1958 = vmax.f32 %v1950, 0.0
        %v1959 = vmax.f32 %v1951, 0.0
        %v1960 = vmax.f32 %v1952, 0.0
        %v1961 = vmax.f32 %v1953, 0.0
        %s1962 = sld [smem:[#allocation2 + $0xb]]
        %v1963 = vstv %s1962
        %v1964 = vmul.f32 %v1963, %v1954
        %v1965 = vmul.f32 %v1963, %v1955
        %v1966 = vmul.f32 %v1963, %v1956
        %v1967 = vmul.f32 %v1963, %v1957
        %v1968 = vmul.f32 %v1963, %v1958
        %v1969 = vmul.f32 %v1963, %v1959
        %v1970 = vmul.f32 %v1963, %v1960
        %v1971 = vmul.f32 %v1963, %v1961
        %v1972 = vadd.f32 %v1407, %v1964
        %v1973 = vadd.f32 %v1408, %v1965
        %v1974 = vadd.f32 %v1409, %v1966
        %v1975 = vadd.f32 %v1410, %v1967
        %v1976 = vadd.f32 %v1411, %v1968
        %v1977 = vadd.f32 %v1412, %v1969
        %v1978 = vadd.f32 %v1413, %v1970
        %v1979 = vadd.f32 %v1414, %v1971
        %v1980 = vmin.f32 %v1972, 1.0
        %v1981 = vmin.f32 %v1973, 1.0
        %v1982 = vmin.f32 %v1974, 1.0
        %v1983 = vmin.f32 %v1975, 1.0
        %v1984 = vmin.f32 %v1976, 1.0
        %v1985 = vmin.f32 %v1977, 1.0
        %v1986 = vmin.f32 %v1978, 1.0
        %v1987 = vmin.f32 %v1979, 1.0
        %v1988 = vmax.f32 %v1980, 0.0
        %v1989 = vmax.f32 %v1981, 0.0
        %v1990 = vmax.f32 %v1982, 0.0
        %v1991 = vmax.f32 %v1983, 0.0
        %v1992 = vmax.f32 %v1984, 0.0
        %v1993 = vmax.f32 %v1985, 0.0
        %v1994 = vmax.f32 %v1986, 0.0
        %v1995 = vmax.f32 %v1987, 0.0
        %v2004 = vcombine.low %v1988, %v1989
        %v2005 = vcombine.low %v1990, %v1991
        %v2006 = vcombine.low %v1992, %v1993
        %v2007 = vcombine.low %v1994, %v1995
        %v2009 = vunpack.c.l.s4 1966171168
        %v2010 = vunpack.c.0.s8 %v2009
        %v2011 = vlaneseq
        %v2012 = vshrl.u32 %v2011, 7
        %v2013 = vsub.s32 %v2010, %v2012
        %v2014 = vrot.slane %v2004, %v2013
        %v2016 = vunpack.c.l.s4 1966171168
        %v2017 = vunpack.c.0.s8 %v2016
        %v2018 = vlaneseq
        %v2019 = vshrl.u32 %v2018, 7
        %v2020 = vsub.s32 %v2017, %v2019
        %v2021 = vrot.slane %v2005, %v2020
        %v2023 = vunpack.c.l.s4 1966171168
        %v2024 = vunpack.c.0.s8 %v2023
        %v2025 = vlaneseq
        %v2026 = vshrl.u32 %v2025, 7
        %v2027 = vsub.s32 %v2024, %v2026
        %v2028 = vrot.slane %v2006, %v2027
        %v2030 = vunpack.c.l.s4 1966171168
        %v2031 = vunpack.c.0.s8 %v2030
        %v2032 = vlaneseq
        %v2033 = vshrl.u32 %v2032, 7
        %v2034 = vsub.s32 %v2031, %v2033
        %v2035 = vrot.slane %v2007, %v2034
        %v2036 = vcombine.low %v2014, %v2021
        %v2037 = vcombine.low %v2028, %v2035
        %v2039 = vunpack.c.l.s4 1966171168
        %v2040 = vunpack.c.0.s8 %v2039
        %v2041 = vlaneseq
        %v2042 = vshrl.u32 %v2041, 7
        %v2043 = vsub.s32 %v2040, %v2042
        %v2044 = vrot.slane %v2036, %v2043
        %v2046 = vunpack.c.l.s4 1966171168
        %v2047 = vunpack.c.0.s8 %v2046
        %v2048 = vlaneseq
        %v2049 = vshrl.u32 %v2048, 7
        %v2050 = vsub.s32 %v2047, %v2049
        %v2051 = vrot.slane %v2037, %v2050
        %v2052 = vcombine.low %v2044, %v2051
        %2054 = vst [vmem:[%s264] sm:$0xff] %v2052
        %s2055 = sand.u32 %s148, 1
        %s2056 = scalar_lea.sflag [#allocation3], %s2055
        %s2057 = sand.u32 %s148, 1
        %s2058 = smul.addr %s2057, 8
        %s2059 = scalar_lea.vmem [#allocation5], %s2058
        // Predicated region
        $region45: #{tpu_custom_call.1} parent=39 // pred_check
          %p2060 = pneg %p158
        $region46: #{tpu_custom_call.1} parent=39 // pred_check_branch
          %2062 = sbr.rel (%p2060) target = $region48
        $region47: #{tpu_custom_call.1} parent=39 // pred_region
          %s2063 = smul.u32 8, %s20
          %s2065 = ssub.s32 128, 128
          %2066 = vsyncadd %s2056, %s2065
          %s2067 = smul.addr %s2063, 16
          %s2068 = scalar_lea.hbm %s5, %s2067
          %s2070 = sshll.u32 %s2059, 4
          %s2071 = int_to_ptr.vmem [resolvable:$true] %s2070
          %2073 = dma.vmem_to_hbm [thread:$0]  %s2071, 128, %s2068, %s2056
        $region48: #{tpu_custom_call.1} parent=39 // pred_fallthru
          _
      $region40: #{tpu_custom_call.1} parent=5 // pred_fallthru
        _
      %p2074 = scmp.le.s32.totalorder 2, %s15
      // Predicated region
      $region49: #{tpu_custom_call.1} parent=5 // pred_check
        %p2075 = pneg %p2074
      $region50: #{tpu_custom_call.1} parent=5 // pred_check_branch
        %2077 = sbr.rel (%p2075) target = $region52
      $region51: #{tpu_custom_call.1} parent=5 // pred_region
        %s2078 = ssub.s32 %s15, 2
        // Predicated region
        $region53: #{tpu_custom_call.1} parent=51 // pred_check
          %p2079 = pneg %p164
        $region54: #{tpu_custom_call.1} parent=51 // pred_check_branch
          %2081 = sbr.rel (%p2079) target = $region56
        $region55: #{tpu_custom_call.1} parent=51 // pred_region
          %s2082 = sand.u32 %s149, 1
          %s2083 = scalar_lea.sflag [#allocation3], %s2082
          %s2084 = sand.u32 %s149, 1
          %s2085 = smul.addr %s2084, 8
          %s2086 = scalar_lea.vmem [#allocation5], %s2085
          %2087 = dma.done %s2083, 128
        $region56: #{tpu_custom_call.1} parent=51 // pred_fallthru
          _
      $region52: #{tpu_custom_call.1} parent=5 // pred_fallthru
        _
    $region6: #{tpu_custom_call.1} parent=1 // loop_footer
      %s19 = sadd.s32 1, %s15
    $region7: #{tpu_custom_call.1} parent=1 // loop_footer_branch
      %14 = sbr.rel target = $region3
    $region8: #{tpu_custom_call.1} parent=1 // loop_exit
      _
    %2088 = vsyncpa [#allocation3], 1
    %s2089 = scalar_lea.sflag [#allocation3], 1
    %2090 = vsyncpa %s2089, 1
    %2091 = vsyncpa [#allocation4], 1
    %s2092 = scalar_lea.sflag [#allocation4], 1
    %2093 = vsyncpa %s2092, 1

</llo_original>
